<compile_context>
chip_gen: v6e
topology: v6e:2x2x1
jax: 0.10.0
libtpu: 0.0.40
codegen_flags: <defaults>
</compile_context>

<pallas_src>
import math

import jax
import jax.numpy as jnp
from jax.experimental import pallas as pl
from jax.experimental.pallas import tpu as pltpu


def _round_up(x, m):
    return ((x + m - 1) // m) * m


def lstm_fused_kernel(ids_ref, table_ref, whh_ref, h0_ref, c0_ref, wd_ref, bd_ref,
                      logits_ref, hn_ref, cn_ref):
    """Embedding gather + whole-sequence LSTM + dense head in one invocation.

    ids_ref:    SMEM (B*T,) int32  token ids, batch-major flatten (idx = b*T + t)
    table_ref:  VMEM (N, 4H)       fused  emb @ W_ih + (b_ih + b_hh), gate order (i, f, g, o)
    whh_ref:    VMEM (H, 4H)       fused hidden->gate weights
    h0/c0:      VMEM (B, H)        initial state
    wd_ref:     VMEM (H, Np)       dense weights, zero-padded to Np (multiple of 128 lanes)
    bd_ref:     VMEM (1, Np)       dense bias, zero-padded
    logits_ref: VMEM (B, T, Np)    per-step logits (batch_first, lane-dense)
    hn/cn:      VMEM (B, H)        final state
    """
    B, H = h0_ref.shape
    T = ids_ref.shape[0] // B
    Np = wd_ref.shape[1]

    # 1) In-kernel gather of the pre-fused (embedding @ W_ih + bias) rows, hoisted out of the
    #    recurrence.  Each row is a dynamic single-sublane slice of the (N, 4H) table.
    xw_steps = []
    for t in range(T):
        rows = [table_ref[pl.ds(ids_ref[b * T + t], 1), :] for b in range(B)]
        xw_steps.append(jnp.concatenate(rows, axis=0))          # (B, 4H)

    # 2) Sequential recurrence, statically unrolled; all state register-resident.
    w_hh = whh_ref[...]
    h = h0_ref[...]
    c = c0_ref[...]
    lane = jax.lax.broadcasted_iota(jnp.int32, (B, 4 * H), 1)
    g_mask = (lane >= 2 * H) & (lane < 3 * H)                   # lanes holding the g gate
    hs = []
    for t in range(T):
        gates = xw_steps[t] + jnp.dot(h, w_hh, preferred_element_type=jnp.float32)
        # Whole-vreg transcendentals (EUP slot) + one select, instead of 4 sub-vreg activations.
        act = jnp.where(g_mask, jnp.tanh(gates), jax.nn.sigmoid(gates))
        i_g = act[:, 0 * H:1 * H]
        f_g = act[:, 1 * H:2 * H]
        g_g = act[:, 2 * H:3 * H]
        o_g = act[:, 3 * H:4 * H]
        c = f_g * c + i_g * g_g
        h = o_g * jnp.tanh(c)
        hs.append(h)

    hn_ref[...] = h
    cn_ref[...] = c

    # 3) Deferred dense head: reorder the hidden history to batch-major once (static row
    #    slices, off the serial critical path), then one (B*T, H) @ (H, Np) matmul and one
    #    lane-dense bulk store.
    h_all = jnp.concatenate(
        [hs[t][b:b + 1, :] for b in range(B) for t in range(T)], axis=0)   # (B*T, H)
    logits = jnp.dot(h_all, wd_ref[...], preferred_element_type=jnp.float32) + bd_ref[...]
    logits_ref[...] = logits.reshape(B, T, Np)


def make_params(key, n_notes, embedding_size, hidden_size):
    """Deterministic parameter init (shapes follow torch.nn.{Embedding,LSTM,Linear}),
    stored in fused / padded layout for the kernel."""
    E, H, N = embedding_size, hidden_size, n_notes
    Np = max(128, _round_up(N, 128))
    keys = jax.random.split(key, 7)
    k = 1.0 / math.sqrt(H)
    emb = jax.random.normal(keys[0], (N, E), jnp.float32)                    # nn.Embedding weight
    w_ih = jax.random.uniform(keys[1], (E, 4 * H), jnp.float32, -k, k)       # weight_ih_l0^T fused
    w_hh = jax.random.uniform(keys[2], (H, 4 * H), jnp.float32, -k, k)       # weight_hh_l0^T fused
    b_ih = jax.random.uniform(keys[3], (1, 4 * H), jnp.float32, -k, k)
    b_hh = jax.random.uniform(keys[4], (1, 4 * H), jnp.float32, -k, k)
    w_d = jax.random.uniform(keys[5], (H, N), jnp.float32, -k, k)            # dense weight^T
    b_d = jax.random.uniform(keys[6], (1, N), jnp.float32, -k, k)
    b = b_ih + b_hh
    # Fold Embedding -> input projection -> bias into a single (N, 4H) gather table.
    table = emb @ w_ih + b
    w_d_pad = jnp.zeros((H, Np), jnp.float32).at[:, :N].set(w_d)             # lane-pad to 128
    b_d_pad = jnp.zeros((1, Np), jnp.float32).at[:, :N].set(b_d)
    return dict(emb=emb, w_ih=w_ih, b=b, table=table, w_hh=w_hh,
                w_d=w_d_pad, b_d=b_d_pad)


@jax.jit
def rnn_forward(params, x_tokens, prev_state):
    """x_tokens: (B, T) int32; prev_state: (h0, c0) each (1, B, H).
    Returns (logits (B, T, N), (h_n (1, B, H), c_n (1, B, H)))."""
    B, T = x_tokens.shape
    N = params["table"].shape[0]
    H = params["w_hh"].shape[0]
    Np = params["w_d"].shape[1]

    ids = x_tokens.reshape(B * T).astype(jnp.int32)          # batch-major flatten (free)
    h0 = prev_state[0][0]                                    # (B, H)
    c0 = prev_state[1][0]                                    # (B, H)

    logits_pad, h_n, c_n = pl.pallas_call(
        lstm_fused_kernel,
        out_shape=(
            jax.ShapeDtypeStruct((B, T, Np), jnp.float32),
            jax.ShapeDtypeStruct((B, H), jnp.float32),
            jax.ShapeDtypeStruct((B, H), jnp.float32),
        ),
        in_specs=[
            pl.BlockSpec(memory_space=pltpu.MemorySpace.SMEM),   # token ids
            pl.BlockSpec(memory_space=pltpu.MemorySpace.VMEM),   # fused gather table
            pl.BlockSpec(memory_space=pltpu.MemorySpace.VMEM),   # fused W_hh
            pl.BlockSpec(memory_space=pltpu.MemorySpace.VMEM),   # h0
            pl.BlockSpec(memory_space=pltpu.MemorySpace.VMEM),   # c0
            pl.BlockSpec(memory_space=pltpu.MemorySpace.VMEM),   # dense W (lane-padded)
            pl.BlockSpec(memory_space=pltpu.MemorySpace.VMEM),   # dense b (lane-padded)
        ],
        out_specs=(
            pl.BlockSpec(memory_space=pltpu.MemorySpace.VMEM),   # logits
            pl.BlockSpec(memory_space=pltpu.MemorySpace.VMEM),   # final h
            pl.BlockSpec(memory_space=pltpu.MemorySpace.VMEM),   # final c
        ),
    )(ids, params["table"], params["w_hh"], h0, c0, params["w_d"], params["b_d"])

    logits = logits_pad[:, :, :N]                            # drop lane padding
    return logits, (h_n[None], c_n[None])


def reference_forward(params, x_tokens, prev_state):
    """Pure-JAX reference matching torch LSTM semantics (gate order i, f, g, o),
    using the unfused emb/W_ih/bias path."""
    N, _ = params["emb"].shape
    H = params["w_hh"].shape[0]
    embed = jnp.take(params["emb"], x_tokens, axis=0)        # (B, T, E)
    h = prev_state[0][0]
    c = prev_state[1][0]
    outs = []
    for t in range(x_tokens.shape[1]):
        gates = embed[:, t] @ params["w_ih"] + h @ params["w_hh"] + params["b"]
        i = jax.nn.sigmoid(gates[:, 0 * H:1 * H])
        f = jax.nn.sigmoid(gates[:, 1 * H:2 * H])
        g = jnp.tanh(gates[:, 2 * H:3 * H])
        o = jax.nn.sigmoid(gates[:, 3 * H:4 * H])
        c = f * c + i * g
        h = o * jnp.tanh(c)
        outs.append(h @ params["w_d"][:, :N] + params["b_d"][:, :N])
    return jnp.stack(outs, axis=1), (h[None], c[None])


if __name__ == "__main__":
    sequence_size, hidden_size, embedding_size, batch_size, n_notes = 8, 32, 16, 2, 64

    key = jax.random.PRNGKey(0)
    pkey, xkey = jax.random.split(key)
    params = make_params(pkey, n_notes, embedding_size, hidden_size)

    x = jax.random.randint(xkey, (batch_size, sequence_size), 0, n_notes, jnp.int32)
    prev_state = (jnp.zeros((1, batch_size, hidden_size), jnp.float32),
                  jnp.zeros((1, batch_size, hidden_size), jnp.float32))

    logits, (h_n, c_n) = rnn_forward(params, x, prev_state)
    jax.block_until_ready((logits, h_n, c_n))

    ref_logits, (ref_h, ref_c) = reference_forward(params, x, prev_state)
    assert logits.shape == (batch_size, sequence_size, n_notes)
    assert h_n.shape == (1, batch_size, hidden_size)
    assert jnp.allclose(logits, ref_logits, atol=1e-4), "logits mismatch"
    assert jnp.allclose(h_n, ref_h, atol=1e-4), "h_n mismatch"
    assert jnp.allclose(c_n, ref_c, atol=1e-4), "c_n mismatch"

    print("KERNEL_OK")
</pallas_src>

<mosaic_0001>
module attributes {stable_mosaic.version = 11 : i64} {
  func.func @lstm_fused_kernel(%arg0: memref<16xi32, #tpu.memory_space<smem>>, %arg1: memref<64x128xf32, #tpu.memory_space<vmem>>, %arg2: memref<32x128xf32, #tpu.memory_space<vmem>>, %arg3: memref<2x32xf32, #tpu.memory_space<vmem>>, %arg4: memref<2x32xf32, #tpu.memory_space<vmem>>, %arg5: memref<32x128xf32, #tpu.memory_space<vmem>>, %arg6: memref<1x128xf32, #tpu.memory_space<vmem>>, %arg7: memref<2x8x128xf32, #tpu.memory_space<vmem>>, %arg8: memref<2x32xf32, #tpu.memory_space<vmem>>, %arg9: memref<2x32xf32, #tpu.memory_space<vmem>>) attributes {dimension_semantics = [], scalar_prefetch = 0 : i64, scratch_operands = 0 : i64, tpu.core_type = #tpu.core_type<tc>} {
    %c0 = arith.constant 0 : index
    %0 = memref.load %arg0[%c0] : memref<16xi32, #tpu.memory_space<smem>>
    %1 = arith.index_cast %0 : i32 to index
    %c0_0 = arith.constant 0 : index
    %2 = vector.load %arg1[%1, %c0_0] : memref<64x128xf32, #tpu.memory_space<vmem>>, vector<1x128xf32>
    %c8 = arith.constant 8 : index
    %3 = memref.load %arg0[%c8] : memref<16xi32, #tpu.memory_space<smem>>
    %4 = arith.index_cast %3 : i32 to index
    %c0_1 = arith.constant 0 : index
    %5 = vector.load %arg1[%4, %c0_1] : memref<64x128xf32, #tpu.memory_space<vmem>>, vector<1x128xf32>
    %6 = tpu.concatenate %2, %5 in 0 : vector<1x128xf32>, vector<1x128xf32> -> vector<2x128xf32>
    %c1 = arith.constant 1 : index
    %7 = memref.load %arg0[%c1] : memref<16xi32, #tpu.memory_space<smem>>
    %8 = arith.index_cast %7 : i32 to index
    %c0_2 = arith.constant 0 : index
    %9 = vector.load %arg1[%8, %c0_2] : memref<64x128xf32, #tpu.memory_space<vmem>>, vector<1x128xf32>
    %c9 = arith.constant 9 : index
    %10 = memref.load %arg0[%c9] : memref<16xi32, #tpu.memory_space<smem>>
    %11 = arith.index_cast %10 : i32 to index
    %c0_3 = arith.constant 0 : index
    %12 = vector.load %arg1[%11, %c0_3] : memref<64x128xf32, #tpu.memory_space<vmem>>, vector<1x128xf32>
    %13 = tpu.concatenate %9, %12 in 0 : vector<1x128xf32>, vector<1x128xf32> -> vector<2x128xf32>
    %c2 = arith.constant 2 : index
    %14 = memref.load %arg0[%c2] : memref<16xi32, #tpu.memory_space<smem>>
    %15 = arith.index_cast %14 : i32 to index
    %c0_4 = arith.constant 0 : index
    %16 = vector.load %arg1[%15, %c0_4] : memref<64x128xf32, #tpu.memory_space<vmem>>, vector<1x128xf32>
    %c10 = arith.constant 10 : index
    %17 = memref.load %arg0[%c10] : memref<16xi32, #tpu.memory_space<smem>>
    %18 = arith.index_cast %17 : i32 to index
    %c0_5 = arith.constant 0 : index
    %19 = vector.load %arg1[%18, %c0_5] : memref<64x128xf32, #tpu.memory_space<vmem>>, vector<1x128xf32>
    %20 = tpu.concatenate %16, %19 in 0 : vector<1x128xf32>, vector<1x128xf32> -> vector<2x128xf32>
    %c3 = arith.constant 3 : index
    %21 = memref.load %arg0[%c3] : memref<16xi32, #tpu.memory_space<smem>>
    %22 = arith.index_cast %21 : i32 to index
    %c0_6 = arith.constant 0 : index
    %23 = vector.load %arg1[%22, %c0_6] : memref<64x128xf32, #tpu.memory_space<vmem>>, vector<1x128xf32>
    %c11 = arith.constant 11 : index
    %24 = memref.load %arg0[%c11] : memref<16xi32, #tpu.memory_space<smem>>
    %25 = arith.index_cast %24 : i32 to index
    %c0_7 = arith.constant 0 : index
    %26 = vector.load %arg1[%25, %c0_7] : memref<64x128xf32, #tpu.memory_space<vmem>>, vector<1x128xf32>
    %27 = tpu.concatenate %23, %26 in 0 : vector<1x128xf32>, vector<1x128xf32> -> vector<2x128xf32>
    %c4 = arith.constant 4 : index
    %28 = memref.load %arg0[%c4] : memref<16xi32, #tpu.memory_space<smem>>
    %29 = arith.index_cast %28 : i32 to index
    %c0_8 = arith.constant 0 : index
    %30 = vector.load %arg1[%29, %c0_8] : memref<64x128xf32, #tpu.memory_space<vmem>>, vector<1x128xf32>
    %c12 = arith.constant 12 : index
    %31 = memref.load %arg0[%c12] : memref<16xi32, #tpu.memory_space<smem>>
    %32 = arith.index_cast %31 : i32 to index
    %c0_9 = arith.constant 0 : index
    %33 = vector.load %arg1[%32, %c0_9] : memref<64x128xf32, #tpu.memory_space<vmem>>, vector<1x128xf32>
    %34 = tpu.concatenate %30, %33 in 0 : vector<1x128xf32>, vector<1x128xf32> -> vector<2x128xf32>
    %c5 = arith.constant 5 : index
    %35 = memref.load %arg0[%c5] : memref<16xi32, #tpu.memory_space<smem>>
    %36 = arith.index_cast %35 : i32 to index
    %c0_10 = arith.constant 0 : index
    %37 = vector.load %arg1[%36, %c0_10] : memref<64x128xf32, #tpu.memory_space<vmem>>, vector<1x128xf32>
    %c13 = arith.constant 13 : index
    %38 = memref.load %arg0[%c13] : memref<16xi32, #tpu.memory_space<smem>>
    %39 = arith.index_cast %38 : i32 to index
    %c0_11 = arith.constant 0 : index
    %40 = vector.load %arg1[%39, %c0_11] : memref<64x128xf32, #tpu.memory_space<vmem>>, vector<1x128xf32>
    %41 = tpu.concatenate %37, %40 in 0 : vector<1x128xf32>, vector<1x128xf32> -> vector<2x128xf32>
    %c6 = arith.constant 6 : index
    %42 = memref.load %arg0[%c6] : memref<16xi32, #tpu.memory_space<smem>>
    %43 = arith.index_cast %42 : i32 to index
    %c0_12 = arith.constant 0 : index
    %44 = vector.load %arg1[%43, %c0_12] : memref<64x128xf32, #tpu.memory_space<vmem>>, vector<1x128xf32>
    %c14 = arith.constant 14 : index
    %45 = memref.load %arg0[%c14] : memref<16xi32, #tpu.memory_space<smem>>
    %46 = arith.index_cast %45 : i32 to index
    %c0_13 = arith.constant 0 : index
    %47 = vector.load %arg1[%46, %c0_13] : memref<64x128xf32, #tpu.memory_space<vmem>>, vector<1x128xf32>
    %48 = tpu.concatenate %44, %47 in 0 : vector<1x128xf32>, vector<1x128xf32> -> vector<2x128xf32>
    %c7 = arith.constant 7 : index
    %49 = memref.load %arg0[%c7] : memref<16xi32, #tpu.memory_space<smem>>
    %50 = arith.index_cast %49 : i32 to index
    %c0_14 = arith.constant 0 : index
    %51 = vector.load %arg1[%50, %c0_14] : memref<64x128xf32, #tpu.memory_space<vmem>>, vector<1x128xf32>
    %c15 = arith.constant 15 : index
    %52 = memref.load %arg0[%c15] : memref<16xi32, #tpu.memory_space<smem>>
    %53 = arith.index_cast %52 : i32 to index
    %c0_15 = arith.constant 0 : index
    %54 = vector.load %arg1[%53, %c0_15] : memref<64x128xf32, #tpu.memory_space<vmem>>, vector<1x128xf32>
    %55 = tpu.concatenate %51, %54 in 0 : vector<1x128xf32>, vector<1x128xf32> -> vector<2x128xf32>
    %c0_16 = arith.constant 0 : index
    %c0_17 = arith.constant 0 : index
    %56 = vector.load %arg2[%c0_16, %c0_17] : memref<32x128xf32, #tpu.memory_space<vmem>>, vector<32x128xf32>
    %c0_18 = arith.constant 0 : index
    %c0_19 = arith.constant 0 : index
    %57 = vector.load %arg3[%c0_18, %c0_19] : memref<2x32xf32, #tpu.memory_space<vmem>>, vector<2x32xf32>
    %c0_20 = arith.constant 0 : index
    %c0_21 = arith.constant 0 : index
    %58 = vector.load %arg4[%c0_20, %c0_21] : memref<2x32xf32, #tpu.memory_space<vmem>>, vector<2x32xf32>
    %59 = tpu.iota {dimensions = array<i32: 1>} : vector<2x128xi32>
    %c64_i32 = arith.constant 64 : i32
    %60 = vector.broadcast %c64_i32 : i32 to vector<2x128xi32>
    %61 = arith.cmpi sge, %59, %60 : vector<2x128xi32>
    %c96_i32 = arith.constant 96 : i32
    %62 = vector.broadcast %c96_i32 : i32 to vector<2x128xi32>
    %63 = arith.cmpi slt, %59, %62 : vector<2x128xi32>
    %64 = arith.andi %61, %63 : vector<2x128xi1>
    %cst = arith.constant dense<0.000000e+00> : vector<2x128xf32>
    %65 = tpu.matmul %57, %56, %cst {dimension_numbers = #tpu.dot_dimension_numbers<[1], [0], [0], [1], [0, 0, 1, 1], [], []>} : vector<2x32xf32>, vector<32x128xf32>, vector<2x128xf32> -> vector<2x128xf32>
    %66 = arith.addf %6, %65 : vector<2x128xf32>
    %67 = math.tanh %66 : vector<2x128xf32>
    %68 = arith.negf %66 : vector<2x128xf32>
    %69 = math.exp %68 : vector<2x128xf32>
    %cst_22 = arith.constant 1.000000e+00 : f32
    %70 = vector.broadcast %cst_22 : f32 to vector<2x128xf32>
    %71 = arith.addf %70, %69 : vector<2x128xf32>
    %72 = arith.divf %70, %71 : vector<2x128xf32>
    %73 = arith.select %64, %67, %72 : vector<2x128xi1>, vector<2x128xf32>
    %74 = vector.extract_strided_slice %73 {offsets = [0, 0], sizes = [2, 32], strides = [1, 1]} : vector<2x128xf32> to vector<2x32xf32>
    %75 = vector.extract_strided_slice %73 {offsets = [0, 32], sizes = [2, 32], strides = [1, 1]} : vector<2x128xf32> to vector<2x32xf32>
    %76 = vector.extract_strided_slice %73 {offsets = [0, 64], sizes = [2, 32], strides = [1, 1]} : vector<2x128xf32> to vector<2x32xf32>
    %77 = vector.extract_strided_slice %73 {offsets = [0, 96], sizes = [2, 32], strides = [1, 1]} : vector<2x128xf32> to vector<2x32xf32>
    %78 = arith.mulf %75, %58 : vector<2x32xf32>
    %79 = arith.mulf %74, %76 : vector<2x32xf32>
    %80 = arith.addf %78, %79 : vector<2x32xf32>
    %81 = math.tanh %80 : vector<2x32xf32>
    %82 = arith.mulf %77, %81 : vector<2x32xf32>
    %cst_23 = arith.constant dense<0.000000e+00> : vector<2x128xf32>
    %83 = tpu.matmul %82, %56, %cst_23 {dimension_numbers = #tpu.dot_dimension_numbers<[1], [0], [0], [1], [0, 0, 1, 1], [], []>} : vector<2x32xf32>, vector<32x128xf32>, vector<2x128xf32> -> vector<2x128xf32>
    %84 = arith.addf %13, %83 : vector<2x128xf32>
    %85 = math.tanh %84 : vector<2x128xf32>
    %86 = arith.negf %84 : vector<2x128xf32>
    %87 = math.exp %86 : vector<2x128xf32>
    %cst_24 = arith.constant 1.000000e+00 : f32
    %88 = vector.broadcast %cst_24 : f32 to vector<2x128xf32>
    %89 = arith.addf %88, %87 : vector<2x128xf32>
    %90 = arith.divf %88, %89 : vector<2x128xf32>
    %91 = arith.select %64, %85, %90 : vector<2x128xi1>, vector<2x128xf32>
    %92 = vector.extract_strided_slice %91 {offsets = [0, 0], sizes = [2, 32], strides = [1, 1]} : vector<2x128xf32> to vector<2x32xf32>
    %93 = vector.extract_strided_slice %91 {offsets = [0, 32], sizes = [2, 32], strides = [1, 1]} : vector<2x128xf32> to vector<2x32xf32>
    %94 = vector.extract_strided_slice %91 {offsets = [0, 64], sizes = [2, 32], strides = [1, 1]} : vector<2x128xf32> to vector<2x32xf32>
    %95 = vector.extract_strided_slice %91 {offsets = [0, 96], sizes = [2, 32], strides = [1, 1]} : vector<2x128xf32> to vector<2x32xf32>
    %96 = arith.mulf %93, %80 : vector<2x32xf32>
    %97 = arith.mulf %92, %94 : vector<2x32xf32>
    %98 = arith.addf %96, %97 : vector<2x32xf32>
    %99 = math.tanh %98 : vector<2x32xf32>
    %100 = arith.mulf %95, %99 : vector<2x32xf32>
    %cst_25 = arith.constant dense<0.000000e+00> : vector<2x128xf32>
    %101 = tpu.matmul %100, %56, %cst_25 {dimension_numbers = #tpu.dot_dimension_numbers<[1], [0], [0], [1], [0, 0, 1, 1], [], []>} : vector<2x32xf32>, vector<32x128xf32>, vector<2x128xf32> -> vector<2x128xf32>
    %102 = arith.addf %20, %101 : vector<2x128xf32>
    %103 = math.tanh %102 : vector<2x128xf32>
    %104 = arith.negf %102 : vector<2x128xf32>
    %105 = math.exp %104 : vector<2x128xf32>
    %cst_26 = arith.constant 1.000000e+00 : f32
    %106 = vector.broadcast %cst_26 : f32 to vector<2x128xf32>
    %107 = arith.addf %106, %105 : vector<2x128xf32>
    %108 = arith.divf %106, %107 : vector<2x128xf32>
    %109 = arith.select %64, %103, %108 : vector<2x128xi1>, vector<2x128xf32>
    %110 = vector.extract_strided_slice %109 {offsets = [0, 0], sizes = [2, 32], strides = [1, 1]} : vector<2x128xf32> to vector<2x32xf32>
    %111 = vector.extract_strided_slice %109 {offsets = [0, 32], sizes = [2, 32], strides = [1, 1]} : vector<2x128xf32> to vector<2x32xf32>
    %112 = vector.extract_strided_slice %109 {offsets = [0, 64], sizes = [2, 32], strides = [1, 1]} : vector<2x128xf32> to vector<2x32xf32>
    %113 = vector.extract_strided_slice %109 {offsets = [0, 96], sizes = [2, 32], strides = [1, 1]} : vector<2x128xf32> to vector<2x32xf32>
    %114 = arith.mulf %111, %98 : vector<2x32xf32>
    %115 = arith.mulf %110, %112 : vector<2x32xf32>
    %116 = arith.addf %114, %115 : vector<2x32xf32>
    %117 = math.tanh %116 : vector<2x32xf32>
    %118 = arith.mulf %113, %117 : vector<2x32xf32>
    %cst_27 = arith.constant dense<0.000000e+00> : vector<2x128xf32>
    %119 = tpu.matmul %118, %56, %cst_27 {dimension_numbers = #tpu.dot_dimension_numbers<[1], [0], [0], [1], [0, 0, 1, 1], [], []>} : vector<2x32xf32>, vector<32x128xf32>, vector<2x128xf32> -> vector<2x128xf32>
    %120 = arith.addf %27, %119 : vector<2x128xf32>
    %121 = math.tanh %120 : vector<2x128xf32>
    %122 = arith.negf %120 : vector<2x128xf32>
    %123 = math.exp %122 : vector<2x128xf32>
    %cst_28 = arith.constant 1.000000e+00 : f32
    %124 = vector.broadcast %cst_28 : f32 to vector<2x128xf32>
    %125 = arith.addf %124, %123 : vector<2x128xf32>
    %126 = arith.divf %124, %125 : vector<2x128xf32>
    %127 = arith.select %64, %121, %126 : vector<2x128xi1>, vector<2x128xf32>
    %128 = vector.extract_strided_slice %127 {offsets = [0, 0], sizes = [2, 32], strides = [1, 1]} : vector<2x128xf32> to vector<2x32xf32>
    %129 = vector.extract_strided_slice %127 {offsets = [0, 32], sizes = [2, 32], strides = [1, 1]} : vector<2x128xf32> to vector<2x32xf32>
    %130 = vector.extract_strided_slice %127 {offsets = [0, 64], sizes = [2, 32], strides = [1, 1]} : vector<2x128xf32> to vector<2x32xf32>
    %131 = vector.extract_strided_slice %127 {offsets = [0, 96], sizes = [2, 32], strides = [1, 1]} : vector<2x128xf32> to vector<2x32xf32>
    %132 = arith.mulf %129, %116 : vector<2x32xf32>
    %133 = arith.mulf %128, %130 : vector<2x32xf32>
    %134 = arith.addf %132, %133 : vector<2x32xf32>
    %135 = math.tanh %134 : vector<2x32xf32>
    %136 = arith.mulf %131, %135 : vector<2x32xf32>
    %cst_29 = arith.constant dense<0.000000e+00> : vector<2x128xf32>
    %137 = tpu.matmul %136, %56, %cst_29 {dimension_numbers = #tpu.dot_dimension_numbers<[1], [0], [0], [1], [0, 0, 1, 1], [], []>} : vector<2x32xf32>, vector<32x128xf32>, vector<2x128xf32> -> vector<2x128xf32>
    %138 = arith.addf %34, %137 : vector<2x128xf32>
    %139 = math.tanh %138 : vector<2x128xf32>
    %140 = arith.negf %138 : vector<2x128xf32>
    %141 = math.exp %140 : vector<2x128xf32>
    %cst_30 = arith.constant 1.000000e+00 : f32
    %142 = vector.broadcast %cst_30 : f32 to vector<2x128xf32>
    %143 = arith.addf %142, %141 : vector<2x128xf32>
    %144 = arith.divf %142, %143 : vector<2x128xf32>
    %145 = arith.select %64, %139, %144 : vector<2x128xi1>, vector<2x128xf32>
    %146 = vector.extract_strided_slice %145 {offsets = [0, 0], sizes = [2, 32], strides = [1, 1]} : vector<2x128xf32> to vector<2x32xf32>
    %147 = vector.extract_strided_slice %145 {offsets = [0, 32], sizes = [2, 32], strides = [1, 1]} : vector<2x128xf32> to vector<2x32xf32>
    %148 = vector.extract_strided_slice %145 {offsets = [0, 64], sizes = [2, 32], strides = [1, 1]} : vector<2x128xf32> to vector<2x32xf32>
    %149 = vector.extract_strided_slice %145 {offsets = [0, 96], sizes = [2, 32], strides = [1, 1]} : vector<2x128xf32> to vector<2x32xf32>
    %150 = arith.mulf %147, %134 : vector<2x32xf32>
    %151 = arith.mulf %146, %148 : vector<2x32xf32>
    %152 = arith.addf %150, %151 : vector<2x32xf32>
    %153 = math.tanh %152 : vector<2x32xf32>
    %154 = arith.mulf %149, %153 : vector<2x32xf32>
    %cst_31 = arith.constant dense<0.000000e+00> : vector<2x128xf32>
    %155 = tpu.matmul %154, %56, %cst_31 {dimension_numbers = #tpu.dot_dimension_numbers<[1], [0], [0], [1], [0, 0, 1, 1], [], []>} : vector<2x32xf32>, vector<32x128xf32>, vector<2x128xf32> -> vector<2x128xf32>
    %156 = arith.addf %41, %155 : vector<2x128xf32>
    %157 = math.tanh %156 : vector<2x128xf32>
    %158 = arith.negf %156 : vector<2x128xf32>
    %159 = math.exp %158 : vector<2x128xf32>
    %cst_32 = arith.constant 1.000000e+00 : f32
    %160 = vector.broadcast %cst_32 : f32 to vector<2x128xf32>
    %161 = arith.addf %160, %159 : vector<2x128xf32>
    %162 = arith.divf %160, %161 : vector<2x128xf32>
    %163 = arith.select %64, %157, %162 : vector<2x128xi1>, vector<2x128xf32>
    %164 = vector.extract_strided_slice %163 {offsets = [0, 0], sizes = [2, 32], strides = [1, 1]} : vector<2x128xf32> to vector<2x32xf32>
    %165 = vector.extract_strided_slice %163 {offsets = [0, 32], sizes = [2, 32], strides = [1, 1]} : vector<2x128xf32> to vector<2x32xf32>
    %166 = vector.extract_strided_slice %163 {offsets = [0, 64], sizes = [2, 32], strides = [1, 1]} : vector<2x128xf32> to vector<2x32xf32>
    %167 = vector.extract_strided_slice %163 {offsets = [0, 96], sizes = [2, 32], strides = [1, 1]} : vector<2x128xf32> to vector<2x32xf32>
    %168 = arith.mulf %165, %152 : vector<2x32xf32>
    %169 = arith.mulf %164, %166 : vector<2x32xf32>
    %170 = arith.addf %168, %169 : vector<2x32xf32>
    %171 = math.tanh %170 : vector<2x32xf32>
    %172 = arith.mulf %167, %171 : vector<2x32xf32>
    %cst_33 = arith.constant dense<0.000000e+00> : vector<2x128xf32>
    %173 = tpu.matmul %172, %56, %cst_33 {dimension_numbers = #tpu.dot_dimension_numbers<[1], [0], [0], [1], [0, 0, 1, 1], [], []>} : vector<2x32xf32>, vector<32x128xf32>, vector<2x128xf32> -> vector<2x128xf32>
    %174 = arith.addf %48, %173 : vector<2x128xf32>
    %175 = math.tanh %174 : vector<2x128xf32>
    %176 = arith.negf %174 : vector<2x128xf32>
    %177 = math.exp %176 : vector<2x128xf32>
    %cst_34 = arith.constant 1.000000e+00 : f32
    %178 = vector.broadcast %cst_34 : f32 to vector<2x128xf32>
    %179 = arith.addf %178, %177 : vector<2x128xf32>
    %180 = arith.divf %178, %179 : vector<2x128xf32>
    %181 = arith.select %64, %175, %180 : vector<2x128xi1>, vector<2x128xf32>
    %182 = vector.extract_strided_slice %181 {offsets = [0, 0], sizes = [2, 32], strides = [1, 1]} : vector<2x128xf32> to vector<2x32xf32>
    %183 = vector.extract_strided_slice %181 {offsets = [0, 32], sizes = [2, 32], strides = [1, 1]} : vector<2x128xf32> to vector<2x32xf32>
    %184 = vector.extract_strided_slice %181 {offsets = [0, 64], sizes = [2, 32], strides = [1, 1]} : vector<2x128xf32> to vector<2x32xf32>
    %185 = vector.extract_strided_slice %181 {offsets = [0, 96], sizes = [2, 32], strides = [1, 1]} : vector<2x128xf32> to vector<2x32xf32>
    %186 = arith.mulf %183, %170 : vector<2x32xf32>
    %187 = arith.mulf %182, %184 : vector<2x32xf32>
    %188 = arith.addf %186, %187 : vector<2x32xf32>
    %189 = math.tanh %188 : vector<2x32xf32>
    %190 = arith.mulf %185, %189 : vector<2x32xf32>
    %cst_35 = arith.constant dense<0.000000e+00> : vector<2x128xf32>
    %191 = tpu.matmul %190, %56, %cst_35 {dimension_numbers = #tpu.dot_dimension_numbers<[1], [0], [0], [1], [0, 0, 1, 1], [], []>} : vector<2x32xf32>, vector<32x128xf32>, vector<2x128xf32> -> vector<2x128xf32>
    %192 = arith.addf %55, %191 : vector<2x128xf32>
    %193 = math.tanh %192 : vector<2x128xf32>
    %194 = arith.negf %192 : vector<2x128xf32>
    %195 = math.exp %194 : vector<2x128xf32>
    %cst_36 = arith.constant 1.000000e+00 : f32
    %196 = vector.broadcast %cst_36 : f32 to vector<2x128xf32>
    %197 = arith.addf %196, %195 : vector<2x128xf32>
    %198 = arith.divf %196, %197 : vector<2x128xf32>
    %199 = arith.select %64, %193, %198 : vector<2x128xi1>, vector<2x128xf32>
    %200 = vector.extract_strided_slice %199 {offsets = [0, 0], sizes = [2, 32], strides = [1, 1]} : vector<2x128xf32> to vector<2x32xf32>
    %201 = vector.extract_strided_slice %199 {offsets = [0, 32], sizes = [2, 32], strides = [1, 1]} : vector<2x128xf32> to vector<2x32xf32>
    %202 = vector.extract_strided_slice %199 {offsets = [0, 64], sizes = [2, 32], strides = [1, 1]} : vector<2x128xf32> to vector<2x32xf32>
    %203 = vector.extract_strided_slice %199 {offsets = [0, 96], sizes = [2, 32], strides = [1, 1]} : vector<2x128xf32> to vector<2x32xf32>
    %204 = arith.mulf %201, %188 : vector<2x32xf32>
    %205 = arith.mulf %200, %202 : vector<2x32xf32>
    %206 = arith.addf %204, %205 : vector<2x32xf32>
    %207 = math.tanh %206 : vector<2x32xf32>
    %208 = arith.mulf %203, %207 : vector<2x32xf32>
    %c0_37 = arith.constant 0 : index
    %c0_38 = arith.constant 0 : index
    %209 = vector.load %arg8[%c0_37, %c0_38] : memref<2x32xf32, #tpu.memory_space<vmem>>, vector<2x32xf32>
    tpu.vector_store %arg8[%c0_37, %c0_38], %208 {strides = array<i32>} : memref<2x32xf32, #tpu.memory_space<vmem>>, vector<2x32xf32>,
    %c0_39 = arith.constant 0 : index
    %c0_40 = arith.constant 0 : index
    %210 = vector.load %arg9[%c0_39, %c0_40] : memref<2x32xf32, #tpu.memory_space<vmem>>, vector<2x32xf32>
    tpu.vector_store %arg9[%c0_39, %c0_40], %206 {strides = array<i32>} : memref<2x32xf32, #tpu.memory_space<vmem>>, vector<2x32xf32>,
    %211 = vector.extract_strided_slice %82 {offsets = [0, 0], sizes = [1, 32], strides = [1, 1]} : vector<2x32xf32> to vector<1x32xf32>
    %212 = vector.extract_strided_slice %100 {offsets = [0, 0], sizes = [1, 32], strides = [1, 1]} : vector<2x32xf32> to vector<1x32xf32>
    %213 = vector.extract_strided_slice %118 {offsets = [0, 0], sizes = [1, 32], strides = [1, 1]} : vector<2x32xf32> to vector<1x32xf32>
    %214 = vector.extract_strided_slice %136 {offsets = [0, 0], sizes = [1, 32], strides = [1, 1]} : vector<2x32xf32> to vector<1x32xf32>
    %215 = vector.extract_strided_slice %154 {offsets = [0, 0], sizes = [1, 32], strides = [1, 1]} : vector<2x32xf32> to vector<1x32xf32>
    %216 = vector.extract_strided_slice %172 {offsets = [0, 0], sizes = [1, 32], strides = [1, 1]} : vector<2x32xf32> to vector<1x32xf32>
    %217 = vector.extract_strided_slice %190 {offsets = [0, 0], sizes = [1, 32], strides = [1, 1]} : vector<2x32xf32> to vector<1x32xf32>
    %218 = vector.extract_strided_slice %208 {offsets = [0, 0], sizes = [1, 32], strides = [1, 1]} : vector<2x32xf32> to vector<1x32xf32>
    %219 = vector.extract_strided_slice %82 {offsets = [1, 0], sizes = [1, 32], strides = [1, 1]} : vector<2x32xf32> to vector<1x32xf32>
    %220 = vector.extract_strided_slice %100 {offsets = [1, 0], sizes = [1, 32], strides = [1, 1]} : vector<2x32xf32> to vector<1x32xf32>
    %221 = vector.extract_strided_slice %118 {offsets = [1, 0], sizes = [1, 32], strides = [1, 1]} : vector<2x32xf32> to vector<1x32xf32>
    %222 = vector.extract_strided_slice %136 {offsets = [1, 0], sizes = [1, 32], strides = [1, 1]} : vector<2x32xf32> to vector<1x32xf32>
    %223 = vector.extract_strided_slice %154 {offsets = [1, 0], sizes = [1, 32], strides = [1, 1]} : vector<2x32xf32> to vector<1x32xf32>
    %224 = vector.extract_strided_slice %172 {offsets = [1, 0], sizes = [1, 32], strides = [1, 1]} : vector<2x32xf32> to vector<1x32xf32>
    %225 = vector.extract_strided_slice %190 {offsets = [1, 0], sizes = [1, 32], strides = [1, 1]} : vector<2x32xf32> to vector<1x32xf32>
    %226 = vector.extract_strided_slice %208 {offsets = [1, 0], sizes = [1, 32], strides = [1, 1]} : vector<2x32xf32> to vector<1x32xf32>
    %227 = tpu.concatenate %211, %212, %213, %214, %215, %216, %217, %218, %219, %220, %221, %222, %223, %224, %225, %226 in 0 : vector<1x32xf32>, vector<1x32xf32>, vector<1x32xf32>, vector<1x32xf32>, vector<1x32xf32>, vector<1x32xf32>, vector<1x32xf32>, vector<1x32xf32>, vector<1x32xf32>, vector<1x32xf32>, vector<1x32xf32>, vector<1x32xf32>, vector<1x32xf32>, vector<1x32xf32>, vector<1x32xf32>, vector<1x32xf32> -> vector<16x32xf32>
    %c0_41 = arith.constant 0 : index
    %c0_42 = arith.constant 0 : index
    %228 = vector.load %arg5[%c0_41, %c0_42] : memref<32x128xf32, #tpu.memory_space<vmem>>, vector<32x128xf32>
    %cst_43 = arith.constant dense<0.000000e+00> : vector<16x128xf32>
    %229 = tpu.matmul %227, %228, %cst_43 {dimension_numbers = #tpu.dot_dimension_numbers<[1], [0], [0], [1], [0, 0, 1, 1], [], []>} : vector<16x32xf32>, vector<32x128xf32>, vector<16x128xf32> -> vector<16x128xf32>
    %c0_44 = arith.constant 0 : index
    %c0_45 = arith.constant 0 : index
    %230 = vector.load %arg6[%c0_44, %c0_45] : memref<1x128xf32, #tpu.memory_space<vmem>>, vector<1x128xf32>
    %231 = vector.broadcast %230 : vector<1x128xf32> to vector<16x128xf32>
    %232 = arith.addf %229, %231 : vector<16x128xf32>
    %233 = vector.shape_cast %232 : vector<16x128xf32> to vector<2x8x128xf32>
    %c0_46 = arith.constant 0 : index
    %c0_47 = arith.constant 0 : index
    %c0_48 = arith.constant 0 : index
    %234 = vector.load %arg7[%c0_46, %c0_47, %c0_48] : memref<2x8x128xf32, #tpu.memory_space<vmem>>, vector<2x8x128xf32>
    tpu.vector_store %arg7[%c0_46, %c0_47, %c0_48], %233 {strides = array<i32>} : memref<2x8x128xf32, #tpu.memory_space<vmem>>, vector<2x8x128xf32>,
    return
  }
}

</mosaic_0001>

<llo_original>
// kernel: rnn_forward.1
$region0: #{rnn_forward.1}
  #allocation0 [shape = 'u32[]', space=smem, size = 0x4, offset = 0x4, fixed_abs, tag = 'smem constant byte address 0x4 - core index']
  #allocation1 [shape = 'u32[144,128]{1,0:T(1,128)}', space=vmem, size = 0x12000, scoped, tag = 'internal scratch']
  %s0 = inlined_call_operand.vmem [shape: s32[16], index: 0, kind: input, shape index: {}]
  %s1 = inlined_call_operand.hbm [shape: f32[64,128], index: 1, kind: input, shape index: {}]
  %s2 = inlined_call_operand.hbm [shape: f32[32,128], index: 2, kind: input, shape index: {}]
  %s3 = inlined_call_operand.vmem [shape: f32[2,32], index: 3, kind: input, shape index: {}]
  %s4 = inlined_call_operand.vmem [shape: f32[2,32], index: 4, kind: input, shape index: {}]
  %s5 = inlined_call_operand.hbm [shape: f32[32,128], index: 5, kind: input, shape index: {}]
  %s6 = inlined_call_operand.hbm [shape: f32[1,128], index: 6, kind: input, shape index: {}]
  %s7 = inlined_call_operand.hbm [shape: f32[2,8,128], index: 7, kind: output, shape index: {0}]
  %s8 = inlined_call_operand.hbm [shape: f32[2,32], index: 8, kind: output, shape index: {1}]
  %s9 = inlined_call_operand.hbm [shape: f32[2,32], index: 9, kind: output, shape index: {2}]
  %10 = xla_tuple %s7, %s8, %s9
  %s11 = sld [smem:[#allocation0]]
  $region74: #{rnn_forward.1} parent=0
    _
  %s13 = ssub.s32 1, %s11
  %s14 = scalar_select 0, %s13, %s11
  $region1: #{rnn_forward.1} parent=0
    #allocation2 [shape = 'u8[512]{0}', space=smem, size = 0x200, scoped, tag = 'input window, operand 0, single buffered']
    #allocation3 [shape = 's32[1]{0}', space=sflag, size = 0x4, scoped, tag = 'scoped memory for rnn_forward.1']
    #allocation4 [shape = 's32[1]{0}', space=sflag, size = 0x4, scoped, tag = 'scoped memory for rnn_forward.1']
    #allocation5 [shape = 's32[1]{0}', space=sflag, size = 0x4, scoped, tag = 'scoped memory for rnn_forward.1']
    #allocation6 [shape = 'u8[32768]{0}', space=vmem, size = 0x8000, scoped, tag = 'input window, operand 1, single buffered']
    #allocation7 [shape = 'u8[16384]{0}', space=vmem, size = 0x4000, scoped, tag = 'input window, operand 2, single buffered']
    #allocation8 [shape = 's32[1]{0}', space=sflag, size = 0x4, scoped, tag = 'scoped memory for rnn_forward.1']
    #allocation9 [shape = 'u8[16384]{0}', space=vmem, size = 0x4000, scoped, tag = 'input window, operand 5, single buffered']
    #allocation10 [shape = 'u8[512]{0}', space=vmem, size = 0x400, scoped, tag = 'input window, operand 6, single buffered']
    #allocation11 [shape = 's32[1]{0}', space=sflag, size = 0x4, scoped, tag = 'scoped memory for rnn_forward.1']
    #allocation12 [shape = 'u8[8192]{0}', space=vmem, size = 0x2000, scoped, tag = 'output window, operand 0, single buffered']
    #allocation13 [shape = 'u8[1024]{0}', space=vmem, size = 0x400, scoped, tag = 'output window, operand 1, single buffered']
    #allocation14 [shape = 's32[1]{0}', space=sflag, size = 0x4, scoped, tag = 'scoped memory for rnn_forward.1']
    #allocation15 [shape = 'u8[1024]{0}', space=vmem, size = 0x400, scoped, tag = 'output window, operand 2, single buffered']
    %15 = vsyncpa [#allocation5], 0
    %16 = vsyncpa [#allocation3], 0
    %17 = vsyncpa [#allocation8], 0
    %18 = vsyncpa [#allocation11], 0
    %19 = vsyncpa [#allocation4], 0
    %20 = vsyncpa [#allocation14], 0
    // Predicated region
    $region2: #{rnn_forward.1} parent=1 // pred_check
      _
    $region3: #{rnn_forward.1} parent=1 // pred_check_branch
      %22 = sbr.rel (0) target = $region5
    $region4: #{rnn_forward.1} parent=1 // pred_region
      %s24 = ssub.s32 16, 16
      %25 = vsyncadd [#allocation5], %s24
      %s27 = sshll.u32 %s0, 4
      %s28 = int_to_ptr.vmem [resolvable:$true] %s27
      %30 = dma.vmem_to_smem %s28, 16, [#allocation2], [#allocation5]
    $region5: #{rnn_forward.1} parent=1 // pred_fallthru
      _
    // Predicated region
    $region6: #{rnn_forward.1} parent=1 // pred_check
      _
    $region7: #{rnn_forward.1} parent=1 // pred_check_branch
      %32 = sbr.rel (0) target = $region9
    $region8: #{rnn_forward.1} parent=1 // pred_region
      %s34 = ssub.s32 1024, 1024
      %35 = vsyncadd [#allocation3], %s34
      %s36 = sshll.u32 [#allocation6], 4
      %s37 = int_to_ptr.vmem [resolvable:$true] %s36
      %42 = dma.hbm_to_vmem [thread:$0]  %s1, 1024, %s37, [#allocation3], 128, 128, 8
    $region9: #{rnn_forward.1} parent=1 // pred_fallthru
      _
    // Predicated region
    $region10: #{rnn_forward.1} parent=1 // pred_check
      _
    $region11: #{rnn_forward.1} parent=1 // pred_check_branch
      %44 = sbr.rel (0) target = $region13
    $region12: #{rnn_forward.1} parent=1 // pred_region
      %s46 = ssub.s32 512, 512
      %47 = vsyncadd [#allocation8], %s46
      %s48 = sshll.u32 [#allocation7], 4
      %s49 = int_to_ptr.vmem [resolvable:$true] %s48
      %54 = dma.hbm_to_vmem [thread:$0]  %s2, 512, %s49, [#allocation8], 128, 128, 8
    $region13: #{rnn_forward.1} parent=1 // pred_fallthru
      _
    // Predicated region
    $region14: #{rnn_forward.1} parent=1 // pred_check
      _
    $region15: #{rnn_forward.1} parent=1 // pred_check_branch
      %56 = sbr.rel (0) target = $region17
    $region16: #{rnn_forward.1} parent=1 // pred_region
      _
    $region17: #{rnn_forward.1} parent=1 // pred_fallthru
      _
    // Predicated region
    $region18: #{rnn_forward.1} parent=1 // pred_check
      _
    $region19: #{rnn_forward.1} parent=1 // pred_check_branch
      %58 = sbr.rel (0) target = $region21
    $region20: #{rnn_forward.1} parent=1 // pred_region
      _
    $region21: #{rnn_forward.1} parent=1 // pred_fallthru
      _
    // Predicated region
    $region22: #{rnn_forward.1} parent=1 // pred_check
      _
    $region23: #{rnn_forward.1} parent=1 // pred_check_branch
      %60 = sbr.rel (0) target = $region25
    $region24: #{rnn_forward.1} parent=1 // pred_region
      %s62 = ssub.s32 512, 512
      %63 = vsyncadd [#allocation8], %s62
      %s64 = sshll.u32 [#allocation9], 4
      %s65 = int_to_ptr.vmem [resolvable:$true] %s64
      %70 = dma.hbm_to_vmem [thread:$0]  %s5, 512, %s65, [#allocation8], 128, 128, 8
    $region25: #{rnn_forward.1} parent=1 // pred_fallthru
      _
    // Predicated region
    $region26: #{rnn_forward.1} parent=1 // pred_check
      _
    $region27: #{rnn_forward.1} parent=1 // pred_check_branch
      %72 = sbr.rel (0) target = $region29
    $region28: #{rnn_forward.1} parent=1 // pred_region
      %s74 = ssub.s32 16, 16
      %75 = vsyncadd [#allocation11], %s74
      %s77 = sshll.u32 [#allocation10], 4
      %s78 = int_to_ptr.vmem [resolvable:$true] %s77
      %80 = dma.hbm_to_vmem [thread:$0]  %s6, 16, %s78, [#allocation11]
    $region29: #{rnn_forward.1} parent=1 // pred_fallthru
      _
    // Predicated region
    $region30: #{rnn_forward.1} parent=1 // pred_check
      _
    $region31: #{rnn_forward.1} parent=1 // pred_check_branch
      %82 = sbr.rel (0) target = $region33
    $region32: #{rnn_forward.1} parent=1 // pred_region
      %83 = dma.done [#allocation5], 16
    $region33: #{rnn_forward.1} parent=1 // pred_fallthru
      _
    // Predicated region
    $region34: #{rnn_forward.1} parent=1 // pred_check
      _
    $region35: #{rnn_forward.1} parent=1 // pred_check_branch
      %85 = sbr.rel (0) target = $region37
    $region36: #{rnn_forward.1} parent=1 // pred_region
      %86 = dma.done [#allocation3], 1024
    $region37: #{rnn_forward.1} parent=1 // pred_fallthru
      _
    // Predicated region
    $region38: #{rnn_forward.1} parent=1 // pred_check
      _
    $region39: #{rnn_forward.1} parent=1 // pred_check_branch
      %88 = sbr.rel (0) target = $region41
    $region40: #{rnn_forward.1} parent=1 // pred_region
      %89 = dma.done [#allocation8], 512
    $region41: #{rnn_forward.1} parent=1 // pred_fallthru
      _
    // Predicated region
    $region42: #{rnn_forward.1} parent=1 // pred_check
      _
    $region43: #{rnn_forward.1} parent=1 // pred_check_branch
      %91 = sbr.rel (0) target = $region45
    $region44: #{rnn_forward.1} parent=1 // pred_region
      %92 = dma.done [#allocation8], 512
    $region45: #{rnn_forward.1} parent=1 // pred_fallthru
      _
    // Predicated region
    $region46: #{rnn_forward.1} parent=1 // pred_check
      _
    $region47: #{rnn_forward.1} parent=1 // pred_check_branch
      %94 = sbr.rel (0) target = $region49
    $region48: #{rnn_forward.1} parent=1 // pred_region
      %95 = dma.done [#allocation11], 16
    $region49: #{rnn_forward.1} parent=1 // pred_fallthru
      _
    %96 = sfence
    %s97 = sld [smem:[#allocation2]]
    %s98 = scalar_lea.vmem [#allocation6], %s97
    %v99 = vld [vmem:[%s98] sm:$0x1]
    %s100 = sld [smem:[#allocation2 + $0x8]]
    %s101 = scalar_lea.vmem [#allocation6], %s100
    %v102 = vld [vmem:[%s101] sm:$0x1]
    %v104 = vrot.slane %v102, 7
    %vm106 = vcmask 1040384
    %v107 = vsel %vm106, %v99, %v104
    %s108 = sld [smem:[#allocation2 + $0x1]]
    %s109 = scalar_lea.vmem [#allocation6], %s108
    %v110 = vld [vmem:[%s109] sm:$0x1]
    %s111 = sld [smem:[#allocation2 + $0x9]]
    %s112 = scalar_lea.vmem [#allocation6], %s111
    %v113 = vld [vmem:[%s112] sm:$0x1]
    %v115 = vrot.slane %v113, 7
    %v117 = vsel %vm106, %v110, %v115
    %s118 = sld [smem:[#allocation2 + $0x2]]
    %s119 = scalar_lea.vmem [#allocation6], %s118
    %v120 = vld [vmem:[%s119] sm:$0x1]
    %s121 = sld [smem:[#allocation2 + $0xa]]
    %s122 = scalar_lea.vmem [#allocation6], %s121
    %v123 = vld [vmem:[%s122] sm:$0x1]
    %v125 = vrot.slane %v123, 7
    %v127 = vsel %vm106, %v120, %v125
    %s128 = sld [smem:[#allocation2 + $0x3]]
    %s129 = scalar_lea.vmem [#allocation6], %s128
    %v130 = vld [vmem:[%s129] sm:$0x1]
    %s131 = sld [smem:[#allocation2 + $0xb]]
    %s132 = scalar_lea.vmem [#allocation6], %s131
    %v133 = vld [vmem:[%s132] sm:$0x1]
    %v135 = vrot.slane %v133, 7
    %v137 = vsel %vm106, %v130, %v135
    %s138 = sld [smem:[#allocation2 + $0x4]]
    %s139 = scalar_lea.vmem [#allocation6], %s138
    %v140 = vld [vmem:[%s139] sm:$0x1]
    %s141 = sld [smem:[#allocation2 + $0xc]]
    %s142 = scalar_lea.vmem [#allocation6], %s141
    %v143 = vld [vmem:[%s142] sm:$0x1]
    %v145 = vrot.slane %v143, 7
    %v147 = vsel %vm106, %v140, %v145
    %s148 = sld [smem:[#allocation2 + $0x5]]
    %s149 = scalar_lea.vmem [#allocation6], %s148
    %v150 = vld [vmem:[%s149] sm:$0x1]
    %s151 = sld [smem:[#allocation2 + $0xd]]
    %s152 = scalar_lea.vmem [#allocation6], %s151
    %v153 = vld [vmem:[%s152] sm:$0x1]
    %v155 = vrot.slane %v153, 7
    %v157 = vsel %vm106, %v150, %v155
    %s158 = sld [smem:[#allocation2 + $0x6]]
    %s159 = scalar_lea.vmem [#allocation6], %s158
    %v160 = vld [vmem:[%s159] sm:$0x1]
    %s161 = sld [smem:[#allocation2 + $0xe]]
    %s162 = scalar_lea.vmem [#allocation6], %s161
    %v163 = vld [vmem:[%s162] sm:$0x1]
    %v165 = vrot.slane %v163, 7
    %v167 = vsel %vm106, %v160, %v165
    %s168 = sld [smem:[#allocation2 + $0x7]]
    %s169 = scalar_lea.vmem [#allocation6], %s168
    %v170 = vld [vmem:[%s169] sm:$0x1]
    %s171 = sld [smem:[#allocation2 + $0xf]]
    %s172 = scalar_lea.vmem [#allocation6], %s171
    %v173 = vld [vmem:[%s172] sm:$0x1]
    %v175 = vrot.slane %v173, 7
    %v177 = vsel %vm106, %v170, %v175
    %v178 = vld [vmem:[#allocation7] sm:$0xff]
    %v179 = vld [vmem:[#allocation7 + $0x8] sm:$0xff]
    %v180 = vld [vmem:[#allocation7 + $0x10] sm:$0xff]
    %v181 = vld [vmem:[#allocation7 + $0x18] sm:$0xff]
    %v182 = vld [vmem:[%s3] sm:$0x3]
    %v183 = vld [vmem:[%s4] sm:$0x3]
    %v184 = vlaneseq
    %v185 = vand.u32 %v184, 127
    %vm186 = vcmp.ge.s32.totalorder %v185, 64
    %vm187 = vcmp.lt.s32.totalorder %v185, 96
    %vm188 = vmand %vm186, %vm187
    %vm189 = vcmask 261120
    %v191 = vsel %vm189, %v182, 0
    %193 = vmatprep.subr.mxu0 0.0
    %194 = vmatpush1.msra.mxu0 0.0
    %195 = vmatprep.subr.mxu0 0.0
    %196 = vmatpush1.msra.mxu0 0.0
    %197 = vmatprep.subr.mxu0 0.0
    %198 = vmatpush1.msra.mxu0 0.0
    %199 = vmatprep.subr.mxu0 0.0
    %200 = vmatpush1.msra.mxu0 0.0
    %201 = vmatprep.subr.mxu0 0.0
    %202 = vmatpush1.msra.mxu0 0.0
    %203 = vmatprep.subr.mxu0 0.0
    %204 = vmatpush1.msra.mxu0 0.0
    %205 = vmatprep.subr.mxu0 0.0
    %206 = vmatpush1.msra.mxu0 0.0
    %207 = vmatprep.subr.mxu0 0.0
    %208 = vmatpush1.msra.mxu0 0.0
    %209 = vmatprep.subr.mxu0 0.0
    %210 = vmatpush1.msra.mxu0 0.0
    %211 = vmatprep.subr.mxu0 0.0
    %212 = vmatpush1.msra.mxu0 0.0
    %213 = vmatprep.subr.mxu0 0.0
    %214 = vmatpush1.msra.mxu0 0.0
    %215 = vmatprep.subr.mxu0 0.0
    %216 = vmatpush1.msra.mxu0 0.0
    %217 = vmatprep.subr.mxu0 0.0
    %218 = vmatpush1.msra.mxu0 %v181
    %219 = vmatprep.subr.mxu0 0.0
    %220 = vmatpush1.msra.mxu0 %v180
    %221 = vmatprep.subr.mxu0 0.0
    %222 = vmatpush1.msra.mxu0 %v179
    %223 = vmatprep.subr.mxu0 0.0
    %224 = vmatpush1.msra.mxu0 %v178
    %225 = vmatprep.subr.mxu0 0.0
    %226 = vmatpush2.msra.mxu0 0.0
    %227 = vmatprep.subr.mxu0 0.0
    %228 = vmatpush2.msra.mxu0 0.0
    %229 = vmatprep.subr.mxu0 0.0
    %230 = vmatpush2.msra.mxu0 0.0
    %231 = vmatprep.subr.mxu0 0.0
    %232 = vmatpush2.msra.mxu0 0.0
    %233 = vmatprep.subr.mxu0 0.0
    %234 = vmatpush2.msra.mxu0 0.0
    %235 = vmatprep.subr.mxu0 0.0
    %236 = vmatpush2.msra.mxu0 0.0
    %237 = vmatprep.subr.mxu0 0.0
    %238 = vmatpush2.msra.mxu0 0.0
    %239 = vmatprep.subr.mxu0 0.0
    %240 = vmatpush2.msra.mxu0 0.0
    %241 = vmatprep.subr.mxu0 0.0
    %242 = vmatpush2.msra.mxu0 0.0
    %243 = vmatprep.subr.mxu0 0.0
    %244 = vmatpush2.msra.mxu0 0.0
    %245 = vmatprep.subr.mxu0 0.0
    %246 = vmatpush2.msra.mxu0 0.0
    %247 = vmatprep.subr.mxu0 0.0
    %248 = vmatpush2.msra.mxu0 0.0
    %249 = vmatprep.subr.mxu0 0.0
    %250 = vmatpush2.msra.mxu0 0.0
    %251 = vmatprep.subr.mxu0 0.0
    %252 = vmatpush2.msra.mxu0 0.0
    %253 = vmatprep.subr.mxu0 0.0
    %254 = vmatpush2.msra.mxu0 0.0
    %255 = vmatprep.subr.mxu0 0.0
    %256 = vmatpush2.msra.mxu0 0.0
    %257 = vmatprep.mubr.f32.mxu0 0.0
    %258 = vmatmul.mubr.f32.gmra.mxu0 %v191
    %v259 = vpop.f32.mrf.mxu0
    %v260 = vadd.f32 0.0, %v259
    %v261 = vpop.f32.mrf.mxu0
    %262 = vdwg.mxu0
    %v263 = vadd.f32 %v107, %v260
    %v264 = vtanh.pop %v263
    %v265 = vxor.u32 %v263, 2147483648
    %v266 = vmul.f32 %v265, 1.442695
    %v267 = vpow.pop %v266
    %v268 = vadd.f32 %v267, 1.0
    %v269 = vrcp.pop %v268
    %v270 = vmul.f32 1.0, %v269
    %v271 = vsel %vm188, %v264, %v270
    %273 = vrot.lane.b32.xlu0 %v183, 32
    %v274 = vpop.permute.xlu0 %273
    %v276 = vmul.f32 %v271, %v274
    %278 = vrot.lane.b32.xlu0 %v271, 64
    %v279 = vpop.permute.xlu0 %278
    %v281 = vmul.f32 %v271, %v279
    %283 = vrot.lane.b32.xlu0 %v281, 32
    %v284 = vpop.permute.xlu0 %283
    %v286 = vadd.f32 %v276, %v284
    %v287 = vtanh.pop %v286
    %289 = vrot.lane.b32.xlu0 %v287, 64
    %v290 = vpop.permute.xlu0 %289
    %v292 = vmul.f32 %v271, %v290
    %294 = vrot.lane.b32.xlu0 %v292, 32
    %v295 = vpop.permute.xlu0 %294
    %v296 = vsel %vm189, %v295, 0
    %298 = vmatprep.subr.mxu0 0.0
    %299 = vmatpush1.msra.mxu0 0.0
    %300 = vmatprep.subr.mxu0 0.0
    %301 = vmatpush1.msra.mxu0 0.0
    %302 = vmatprep.subr.mxu0 0.0
    %303 = vmatpush1.msra.mxu0 0.0
    %304 = vmatprep.subr.mxu0 0.0
    %305 = vmatpush1.msra.mxu0 0.0
    %306 = vmatprep.subr.mxu0 0.0
    %307 = vmatpush1.msra.mxu0 0.0
    %308 = vmatprep.subr.mxu0 0.0
    %309 = vmatpush1.msra.mxu0 0.0
    %310 = vmatprep.subr.mxu0 0.0
    %311 = vmatpush1.msra.mxu0 0.0
    %312 = vmatprep.subr.mxu0 0.0
    %313 = vmatpush1.msra.mxu0 0.0
    %314 = vmatprep.subr.mxu0 0.0
    %315 = vmatpush1.msra.mxu0 0.0
    %316 = vmatprep.subr.mxu0 0.0
    %317 = vmatpush1.msra.mxu0 0.0
    %318 = vmatprep.subr.mxu0 0.0
    %319 = vmatpush1.msra.mxu0 0.0
    %320 = vmatprep.subr.mxu0 0.0
    %321 = vmatpush1.msra.mxu0 0.0
    %322 = vmatprep.subr.mxu0 0.0
    %323 = vmatpush1.msra.mxu0 %v181
    %324 = vmatprep.subr.mxu0 0.0
    %325 = vmatpush1.msra.mxu0 %v180
    %326 = vmatprep.subr.mxu0 0.0
    %327 = vmatpush1.msra.mxu0 %v179
    %328 = vmatprep.subr.mxu0 0.0
    %329 = vmatpush1.msra.mxu0 %v178
    %330 = vmatprep.subr.mxu0 0.0
    %331 = vmatpush2.msra.mxu0 0.0
    %332 = vmatprep.subr.mxu0 0.0
    %333 = vmatpush2.msra.mxu0 0.0
    %334 = vmatprep.subr.mxu0 0.0
    %335 = vmatpush2.msra.mxu0 0.0
    %336 = vmatprep.subr.mxu0 0.0
    %337 = vmatpush2.msra.mxu0 0.0
    %338 = vmatprep.subr.mxu0 0.0
    %339 = vmatpush2.msra.mxu0 0.0
    %340 = vmatprep.subr.mxu0 0.0
    %341 = vmatpush2.msra.mxu0 0.0
    %342 = vmatprep.subr.mxu0 0.0
    %343 = vmatpush2.msra.mxu0 0.0
    %344 = vmatprep.subr.mxu0 0.0
    %345 = vmatpush2.msra.mxu0 0.0
    %346 = vmatprep.subr.mxu0 0.0
    %347 = vmatpush2.msra.mxu0 0.0
    %348 = vmatprep.subr.mxu0 0.0
    %349 = vmatpush2.msra.mxu0 0.0
    %350 = vmatprep.subr.mxu0 0.0
    %351 = vmatpush2.msra.mxu0 0.0
    %352 = vmatprep.subr.mxu0 0.0
    %353 = vmatpush2.msra.mxu0 0.0
    %354 = vmatprep.subr.mxu0 0.0
    %355 = vmatpush2.msra.mxu0 0.0
    %356 = vmatprep.subr.mxu0 0.0
    %357 = vmatpush2.msra.mxu0 0.0
    %358 = vmatprep.subr.mxu0 0.0
    %359 = vmatpush2.msra.mxu0 0.0
    %360 = vmatprep.subr.mxu0 0.0
    %361 = vmatpush2.msra.mxu0 0.0
    %362 = vmatprep.mubr.f32.mxu0 0.0
    %363 = vmatmul.mubr.f32.gmra.mxu0 %v296
    %v364 = vpop.f32.mrf.mxu0
    %v365 = vadd.f32 0.0, %v364
    %v366 = vpop.f32.mrf.mxu0
    %367 = vdwg.mxu0
    %v368 = vadd.f32 %v117, %v365
    %v369 = vtanh.pop %v368
    %v370 = vxor.u32 %v368, 2147483648
    %v371 = vmul.f32 %v370, 1.442695
    %v372 = vpow.pop %v371
    %v373 = vadd.f32 %v372, 1.0
    %v374 = vrcp.pop %v373
    %v375 = vmul.f32 1.0, %v374
    %v376 = vsel %vm188, %v369, %v375
    %v377 = vmul.f32 %v376, %v286
    %379 = vrot.lane.b32.xlu0 %v376, 64
    %v380 = vpop.permute.xlu0 %379
    %v382 = vmul.f32 %v376, %v380
    %384 = vrot.lane.b32.xlu0 %v382, 32
    %v385 = vpop.permute.xlu0 %384
    %v387 = vadd.f32 %v377, %v385
    %v388 = vtanh.pop %v387
    %390 = vrot.lane.b32.xlu0 %v388, 64
    %v391 = vpop.permute.xlu0 %390
    %v393 = vmul.f32 %v376, %v391
    %395 = vrot.lane.b32.xlu0 %v393, 32
    %v396 = vpop.permute.xlu0 %395
    %v397 = vsel %vm189, %v396, 0
    %399 = vmatprep.subr.mxu0 0.0
    %400 = vmatpush1.msra.mxu0 0.0
    %401 = vmatprep.subr.mxu0 0.0
    %402 = vmatpush1.msra.mxu0 0.0
    %403 = vmatprep.subr.mxu0 0.0
    %404 = vmatpush1.msra.mxu0 0.0
    %405 = vmatprep.subr.mxu0 0.0
    %406 = vmatpush1.msra.mxu0 0.0
    %407 = vmatprep.subr.mxu0 0.0
    %408 = vmatpush1.msra.mxu0 0.0
    %409 = vmatprep.subr.mxu0 0.0
    %410 = vmatpush1.msra.mxu0 0.0
    %411 = vmatprep.subr.mxu0 0.0
    %412 = vmatpush1.msra.mxu0 0.0
    %413 = vmatprep.subr.mxu0 0.0
    %414 = vmatpush1.msra.mxu0 0.0
    %415 = vmatprep.subr.mxu0 0.0
    %416 = vmatpush1.msra.mxu0 0.0
    %417 = vmatprep.subr.mxu0 0.0
    %418 = vmatpush1.msra.mxu0 0.0
    %419 = vmatprep.subr.mxu0 0.0
    %420 = vmatpush1.msra.mxu0 0.0
    %421 = vmatprep.subr.mxu0 0.0
    %422 = vmatpush1.msra.mxu0 0.0
    %423 = vmatprep.subr.mxu0 0.0
    %424 = vmatpush1.msra.mxu0 %v181
    %425 = vmatprep.subr.mxu0 0.0
    %426 = vmatpush1.msra.mxu0 %v180
    %427 = vmatprep.subr.mxu0 0.0
    %428 = vmatpush1.msra.mxu0 %v179
    %429 = vmatprep.subr.mxu0 0.0
    %430 = vmatpush1.msra.mxu0 %v178
    %431 = vmatprep.subr.mxu0 0.0
    %432 = vmatpush2.msra.mxu0 0.0
    %433 = vmatprep.subr.mxu0 0.0
    %434 = vmatpush2.msra.mxu0 0.0
    %435 = vmatprep.subr.mxu0 0.0
    %436 = vmatpush2.msra.mxu0 0.0
    %437 = vmatprep.subr.mxu0 0.0
    %438 = vmatpush2.msra.mxu0 0.0
    %439 = vmatprep.subr.mxu0 0.0
    %440 = vmatpush2.msra.mxu0 0.0
    %441 = vmatprep.subr.mxu0 0.0
    %442 = vmatpush2.msra.mxu0 0.0
    %443 = vmatprep.subr.mxu0 0.0
    %444 = vmatpush2.msra.mxu0 0.0
    %445 = vmatprep.subr.mxu0 0.0
    %446 = vmatpush2.msra.mxu0 0.0
    %447 = vmatprep.subr.mxu0 0.0
    %448 = vmatpush2.msra.mxu0 0.0
    %449 = vmatprep.subr.mxu0 0.0
    %450 = vmatpush2.msra.mxu0 0.0
    %451 = vmatprep.subr.mxu0 0.0
    %452 = vmatpush2.msra.mxu0 0.0
    %453 = vmatprep.subr.mxu0 0.0
    %454 = vmatpush2.msra.mxu0 0.0
    %455 = vmatprep.subr.mxu0 0.0
    %456 = vmatpush2.msra.mxu0 0.0
    %457 = vmatprep.subr.mxu0 0.0
    %458 = vmatpush2.msra.mxu0 0.0
    %459 = vmatprep.subr.mxu0 0.0
    %460 = vmatpush2.msra.mxu0 0.0
    %461 = vmatprep.subr.mxu0 0.0
    %462 = vmatpush2.msra.mxu0 0.0
    %463 = vmatprep.mubr.f32.mxu0 0.0
    %464 = vmatmul.mubr.f32.gmra.mxu0 %v397
    %v465 = vpop.f32.mrf.mxu0
    %v466 = vadd.f32 0.0, %v465
    %v467 = vpop.f32.mrf.mxu0
    %468 = vdwg.mxu0
    %v469 = vadd.f32 %v127, %v466
    %v470 = vtanh.pop %v469
    %v471 = vxor.u32 %v469, 2147483648
    %v472 = vmul.f32 %v471, 1.442695
    %v473 = vpow.pop %v472
    %v474 = vadd.f32 %v473, 1.0
    %v475 = vrcp.pop %v474
    %v476 = vmul.f32 1.0, %v475
    %v477 = vsel %vm188, %v470, %v476
    %v478 = vmul.f32 %v477, %v387
    %480 = vrot.lane.b32.xlu0 %v477, 64
    %v481 = vpop.permute.xlu0 %480
    %v483 = vmul.f32 %v477, %v481
    %485 = vrot.lane.b32.xlu0 %v483, 32
    %v486 = vpop.permute.xlu0 %485
    %v488 = vadd.f32 %v478, %v486
    %v489 = vtanh.pop %v488
    %491 = vrot.lane.b32.xlu0 %v489, 64
    %v492 = vpop.permute.xlu0 %491
    %v494 = vmul.f32 %v477, %v492
    %496 = vrot.lane.b32.xlu0 %v494, 32
    %v497 = vpop.permute.xlu0 %496
    %v498 = vsel %vm189, %v497, 0
    %500 = vmatprep.subr.mxu0 0.0
    %501 = vmatpush1.msra.mxu0 0.0
    %502 = vmatprep.subr.mxu0 0.0
    %503 = vmatpush1.msra.mxu0 0.0
    %504 = vmatprep.subr.mxu0 0.0
    %505 = vmatpush1.msra.mxu0 0.0
    %506 = vmatprep.subr.mxu0 0.0
    %507 = vmatpush1.msra.mxu0 0.0
    %508 = vmatprep.subr.mxu0 0.0
    %509 = vmatpush1.msra.mxu0 0.0
    %510 = vmatprep.subr.mxu0 0.0
    %511 = vmatpush1.msra.mxu0 0.0
    %512 = vmatprep.subr.mxu0 0.0
    %513 = vmatpush1.msra.mxu0 0.0
    %514 = vmatprep.subr.mxu0 0.0
    %515 = vmatpush1.msra.mxu0 0.0
    %516 = vmatprep.subr.mxu0 0.0
    %517 = vmatpush1.msra.mxu0 0.0
    %518 = vmatprep.subr.mxu0 0.0
    %519 = vmatpush1.msra.mxu0 0.0
    %520 = vmatprep.subr.mxu0 0.0
    %521 = vmatpush1.msra.mxu0 0.0
    %522 = vmatprep.subr.mxu0 0.0
    %523 = vmatpush1.msra.mxu0 0.0
    %524 = vmatprep.subr.mxu0 0.0
    %525 = vmatpush1.msra.mxu0 %v181
    %526 = vmatprep.subr.mxu0 0.0
    %527 = vmatpush1.msra.mxu0 %v180
    %528 = vmatprep.subr.mxu0 0.0
    %529 = vmatpush1.msra.mxu0 %v179
    %530 = vmatprep.subr.mxu0 0.0
    %531 = vmatpush1.msra.mxu0 %v178
    %532 = vmatprep.subr.mxu0 0.0
    %533 = vmatpush2.msra.mxu0 0.0
    %534 = vmatprep.subr.mxu0 0.0
    %535 = vmatpush2.msra.mxu0 0.0
    %536 = vmatprep.subr.mxu0 0.0
    %537 = vmatpush2.msra.mxu0 0.0
    %538 = vmatprep.subr.mxu0 0.0
    %539 = vmatpush2.msra.mxu0 0.0
    %540 = vmatprep.subr.mxu0 0.0
    %541 = vmatpush2.msra.mxu0 0.0
    %542 = vmatprep.subr.mxu0 0.0
    %543 = vmatpush2.msra.mxu0 0.0
    %544 = vmatprep.subr.mxu0 0.0
    %545 = vmatpush2.msra.mxu0 0.0
    %546 = vmatprep.subr.mxu0 0.0
    %547 = vmatpush2.msra.mxu0 0.0
    %548 = vmatprep.subr.mxu0 0.0
    %549 = vmatpush2.msra.mxu0 0.0
    %550 = vmatprep.subr.mxu0 0.0
    %551 = vmatpush2.msra.mxu0 0.0
    %552 = vmatprep.subr.mxu0 0.0
    %553 = vmatpush2.msra.mxu0 0.0
    %554 = vmatprep.subr.mxu0 0.0
    %555 = vmatpush2.msra.mxu0 0.0
    %556 = vmatprep.subr.mxu0 0.0
    %557 = vmatpush2.msra.mxu0 0.0
    %558 = vmatprep.subr.mxu0 0.0
    %559 = vmatpush2.msra.mxu0 0.0
    %560 = vmatprep.subr.mxu0 0.0
    %561 = vmatpush2.msra.mxu0 0.0
    %562 = vmatprep.subr.mxu0 0.0
    %563 = vmatpush2.msra.mxu0 0.0
    %564 = vmatprep.mubr.f32.mxu0 0.0
    %565 = vmatmul.mubr.f32.gmra.mxu0 %v498
    %v566 = vpop.f32.mrf.mxu0
    %v567 = vadd.f32 0.0, %v566
    %v568 = vpop.f32.mrf.mxu0
    %569 = vdwg.mxu0
    %v570 = vadd.f32 %v137, %v567
    %v571 = vtanh.pop %v570
    %v572 = vxor.u32 %v570, 2147483648
    %v573 = vmul.f32 %v572, 1.442695
    %v574 = vpow.pop %v573
    %v575 = vadd.f32 %v574, 1.0
    %v576 = vrcp.pop %v575
    %v577 = vmul.f32 1.0, %v576
    %v578 = vsel %vm188, %v571, %v577
    %v579 = vmul.f32 %v578, %v488
    %581 = vrot.lane.b32.xlu0 %v578, 64
    %v582 = vpop.permute.xlu0 %581
    %v584 = vmul.f32 %v578, %v582
    %586 = vrot.lane.b32.xlu0 %v584, 32
    %v587 = vpop.permute.xlu0 %586
    %v589 = vadd.f32 %v579, %v587
    %v590 = vtanh.pop %v589
    %592 = vrot.lane.b32.xlu0 %v590, 64
    %v593 = vpop.permute.xlu0 %592
    %v595 = vmul.f32 %v578, %v593
    %597 = vrot.lane.b32.xlu0 %v595, 32
    %v598 = vpop.permute.xlu0 %597
    %v599 = vsel %vm189, %v598, 0
    %601 = vmatprep.subr.mxu0 0.0
    %602 = vmatpush1.msra.mxu0 0.0
    %603 = vmatprep.subr.mxu0 0.0
    %604 = vmatpush1.msra.mxu0 0.0
    %605 = vmatprep.subr.mxu0 0.0
    %606 = vmatpush1.msra.mxu0 0.0
    %607 = vmatprep.subr.mxu0 0.0
    %608 = vmatpush1.msra.mxu0 0.0
    %609 = vmatprep.subr.mxu0 0.0
    %610 = vmatpush1.msra.mxu0 0.0
    %611 = vmatprep.subr.mxu0 0.0
    %612 = vmatpush1.msra.mxu0 0.0
    %613 = vmatprep.subr.mxu0 0.0
    %614 = vmatpush1.msra.mxu0 0.0
    %615 = vmatprep.subr.mxu0 0.0
    %616 = vmatpush1.msra.mxu0 0.0
    %617 = vmatprep.subr.mxu0 0.0
    %618 = vmatpush1.msra.mxu0 0.0
    %619 = vmatprep.subr.mxu0 0.0
    %620 = vmatpush1.msra.mxu0 0.0
    %621 = vmatprep.subr.mxu0 0.0
    %622 = vmatpush1.msra.mxu0 0.0
    %623 = vmatprep.subr.mxu0 0.0
    %624 = vmatpush1.msra.mxu0 0.0
    %625 = vmatprep.subr.mxu0 0.0
    %626 = vmatpush1.msra.mxu0 %v181
    %627 = vmatprep.subr.mxu0 0.0
    %628 = vmatpush1.msra.mxu0 %v180
    %629 = vmatprep.subr.mxu0 0.0
    %630 = vmatpush1.msra.mxu0 %v179
    %631 = vmatprep.subr.mxu0 0.0
    %632 = vmatpush1.msra.mxu0 %v178
    %633 = vmatprep.subr.mxu0 0.0
    %634 = vmatpush2.msra.mxu0 0.0
    %635 = vmatprep.subr.mxu0 0.0
    %636 = vmatpush2.msra.mxu0 0.0
    %637 = vmatprep.subr.mxu0 0.0
    %638 = vmatpush2.msra.mxu0 0.0
    %639 = vmatprep.subr.mxu0 0.0
    %640 = vmatpush2.msra.mxu0 0.0
    %641 = vmatprep.subr.mxu0 0.0
    %642 = vmatpush2.msra.mxu0 0.0
    %643 = vmatprep.subr.mxu0 0.0
    %644 = vmatpush2.msra.mxu0 0.0
    %645 = vmatprep.subr.mxu0 0.0
    %646 = vmatpush2.msra.mxu0 0.0
    %647 = vmatprep.subr.mxu0 0.0
    %648 = vmatpush2.msra.mxu0 0.0
    %649 = vmatprep.subr.mxu0 0.0
    %650 = vmatpush2.msra.mxu0 0.0
    %651 = vmatprep.subr.mxu0 0.0
    %652 = vmatpush2.msra.mxu0 0.0
    %653 = vmatprep.subr.mxu0 0.0
    %654 = vmatpush2.msra.mxu0 0.0
    %655 = vmatprep.subr.mxu0 0.0
    %656 = vmatpush2.msra.mxu0 0.0
    %657 = vmatprep.subr.mxu0 0.0
    %658 = vmatpush2.msra.mxu0 0.0
    %659 = vmatprep.subr.mxu0 0.0
    %660 = vmatpush2.msra.mxu0 0.0
    %661 = vmatprep.subr.mxu0 0.0
    %662 = vmatpush2.msra.mxu0 0.0
    %663 = vmatprep.subr.mxu0 0.0
    %664 = vmatpush2.msra.mxu0 0.0
    %665 = vmatprep.mubr.f32.mxu0 0.0
    %666 = vmatmul.mubr.f32.gmra.mxu0 %v599
    %v667 = vpop.f32.mrf.mxu0
    %v668 = vadd.f32 0.0, %v667
    %v669 = vpop.f32.mrf.mxu0
    %670 = vdwg.mxu0
    %v671 = vadd.f32 %v147, %v668
    %v672 = vtanh.pop %v671
    %v673 = vxor.u32 %v671, 2147483648
    %v674 = vmul.f32 %v673, 1.442695
    %v675 = vpow.pop %v674
    %v676 = vadd.f32 %v675, 1.0
    %v677 = vrcp.pop %v676
    %v678 = vmul.f32 1.0, %v677
    %v679 = vsel %vm188, %v672, %v678
    %v680 = vmul.f32 %v679, %v589
    %682 = vrot.lane.b32.xlu0 %v679, 64
    %v683 = vpop.permute.xlu0 %682
    %v685 = vmul.f32 %v679, %v683
    %687 = vrot.lane.b32.xlu0 %v685, 32
    %v688 = vpop.permute.xlu0 %687
    %v690 = vadd.f32 %v680, %v688
    %v691 = vtanh.pop %v690
    %693 = vrot.lane.b32.xlu0 %v691, 64
    %v694 = vpop.permute.xlu0 %693
    %v696 = vmul.f32 %v679, %v694
    %698 = vrot.lane.b32.xlu0 %v696, 32
    %v699 = vpop.permute.xlu0 %698
    %v700 = vsel %vm189, %v699, 0
    %702 = vmatprep.subr.mxu0 0.0
    %703 = vmatpush1.msra.mxu0 0.0
    %704 = vmatprep.subr.mxu0 0.0
    %705 = vmatpush1.msra.mxu0 0.0
    %706 = vmatprep.subr.mxu0 0.0
    %707 = vmatpush1.msra.mxu0 0.0
    %708 = vmatprep.subr.mxu0 0.0
    %709 = vmatpush1.msra.mxu0 0.0
    %710 = vmatprep.subr.mxu0 0.0
    %711 = vmatpush1.msra.mxu0 0.0
    %712 = vmatprep.subr.mxu0 0.0
    %713 = vmatpush1.msra.mxu0 0.0
    %714 = vmatprep.subr.mxu0 0.0
    %715 = vmatpush1.msra.mxu0 0.0
    %716 = vmatprep.subr.mxu0 0.0
    %717 = vmatpush1.msra.mxu0 0.0
    %718 = vmatprep.subr.mxu0 0.0
    %719 = vmatpush1.msra.mxu0 0.0
    %720 = vmatprep.subr.mxu0 0.0
    %721 = vmatpush1.msra.mxu0 0.0
    %722 = vmatprep.subr.mxu0 0.0
    %723 = vmatpush1.msra.mxu0 0.0
    %724 = vmatprep.subr.mxu0 0.0
    %725 = vmatpush1.msra.mxu0 0.0
    %726 = vmatprep.subr.mxu0 0.0
    %727 = vmatpush1.msra.mxu0 %v181
    %728 = vmatprep.subr.mxu0 0.0
    %729 = vmatpush1.msra.mxu0 %v180
    %730 = vmatprep.subr.mxu0 0.0
    %731 = vmatpush1.msra.mxu0 %v179
    %732 = vmatprep.subr.mxu0 0.0
    %733 = vmatpush1.msra.mxu0 %v178
    %734 = vmatprep.subr.mxu0 0.0
    %735 = vmatpush2.msra.mxu0 0.0
    %736 = vmatprep.subr.mxu0 0.0
    %737 = vmatpush2.msra.mxu0 0.0
    %738 = vmatprep.subr.mxu0 0.0
    %739 = vmatpush2.msra.mxu0 0.0
    %740 = vmatprep.subr.mxu0 0.0
    %741 = vmatpush2.msra.mxu0 0.0
    %742 = vmatprep.subr.mxu0 0.0
    %743 = vmatpush2.msra.mxu0 0.0
    %744 = vmatprep.subr.mxu0 0.0
    %745 = vmatpush2.msra.mxu0 0.0
    %746 = vmatprep.subr.mxu0 0.0
    %747 = vmatpush2.msra.mxu0 0.0
    %748 = vmatprep.subr.mxu0 0.0
    %749 = vmatpush2.msra.mxu0 0.0
    %750 = vmatprep.subr.mxu0 0.0
    %751 = vmatpush2.msra.mxu0 0.0
    %752 = vmatprep.subr.mxu0 0.0
    %753 = vmatpush2.msra.mxu0 0.0
    %754 = vmatprep.subr.mxu0 0.0
    %755 = vmatpush2.msra.mxu0 0.0
    %756 = vmatprep.subr.mxu0 0.0
    %757 = vmatpush2.msra.mxu0 0.0
    %758 = vmatprep.subr.mxu0 0.0
    %759 = vmatpush2.msra.mxu0 0.0
    %760 = vmatprep.subr.mxu0 0.0
    %761 = vmatpush2.msra.mxu0 0.0
    %762 = vmatprep.subr.mxu0 0.0
    %763 = vmatpush2.msra.mxu0 0.0
    %764 = vmatprep.subr.mxu0 0.0
    %765 = vmatpush2.msra.mxu0 0.0
    %766 = vmatprep.mubr.f32.mxu0 0.0
    %767 = vmatmul.mubr.f32.gmra.mxu0 %v700
    %v768 = vpop.f32.mrf.mxu0
    %v769 = vadd.f32 0.0, %v768
    %v770 = vpop.f32.mrf.mxu0
    %771 = vdwg.mxu0
    %v772 = vadd.f32 %v157, %v769
    %v773 = vtanh.pop %v772
    %v774 = vxor.u32 %v772, 2147483648
    %v775 = vmul.f32 %v774, 1.442695
    %v776 = vpow.pop %v775
    %v777 = vadd.f32 %v776, 1.0
    %v778 = vrcp.pop %v777
    %v779 = vmul.f32 1.0, %v778
    %v780 = vsel %vm188, %v773, %v779
    %v781 = vmul.f32 %v780, %v690
    %783 = vrot.lane.b32.xlu0 %v780, 64
    %v784 = vpop.permute.xlu0 %783
    %v786 = vmul.f32 %v780, %v784
    %788 = vrot.lane.b32.xlu0 %v786, 32
    %v789 = vpop.permute.xlu0 %788
    %v791 = vadd.f32 %v781, %v789
    %v792 = vtanh.pop %v791
    %794 = vrot.lane.b32.xlu0 %v792, 64
    %v795 = vpop.permute.xlu0 %794
    %v797 = vmul.f32 %v780, %v795
    %799 = vrot.lane.b32.xlu0 %v797, 32
    %v800 = vpop.permute.xlu0 %799
    %v801 = vsel %vm189, %v800, 0
    %803 = vmatprep.subr.mxu0 0.0
    %804 = vmatpush1.msra.mxu0 0.0
    %805 = vmatprep.subr.mxu0 0.0
    %806 = vmatpush1.msra.mxu0 0.0
    %807 = vmatprep.subr.mxu0 0.0
    %808 = vmatpush1.msra.mxu0 0.0
    %809 = vmatprep.subr.mxu0 0.0
    %810 = vmatpush1.msra.mxu0 0.0
    %811 = vmatprep.subr.mxu0 0.0
    %812 = vmatpush1.msra.mxu0 0.0
    %813 = vmatprep.subr.mxu0 0.0
    %814 = vmatpush1.msra.mxu0 0.0
    %815 = vmatprep.subr.mxu0 0.0
    %816 = vmatpush1.msra.mxu0 0.0
    %817 = vmatprep.subr.mxu0 0.0
    %818 = vmatpush1.msra.mxu0 0.0
    %819 = vmatprep.subr.mxu0 0.0
    %820 = vmatpush1.msra.mxu0 0.0
    %821 = vmatprep.subr.mxu0 0.0
    %822 = vmatpush1.msra.mxu0 0.0
    %823 = vmatprep.subr.mxu0 0.0
    %824 = vmatpush1.msra.mxu0 0.0
    %825 = vmatprep.subr.mxu0 0.0
    %826 = vmatpush1.msra.mxu0 0.0
    %827 = vmatprep.subr.mxu0 0.0
    %828 = vmatpush1.msra.mxu0 %v181
    %829 = vmatprep.subr.mxu0 0.0
    %830 = vmatpush1.msra.mxu0 %v180
    %831 = vmatprep.subr.mxu0 0.0
    %832 = vmatpush1.msra.mxu0 %v179
    %833 = vmatprep.subr.mxu0 0.0
    %834 = vmatpush1.msra.mxu0 %v178
    %835 = vmatprep.subr.mxu0 0.0
    %836 = vmatpush2.msra.mxu0 0.0
    %837 = vmatprep.subr.mxu0 0.0
    %838 = vmatpush2.msra.mxu0 0.0
    %839 = vmatprep.subr.mxu0 0.0
    %840 = vmatpush2.msra.mxu0 0.0
    %841 = vmatprep.subr.mxu0 0.0
    %842 = vmatpush2.msra.mxu0 0.0
    %843 = vmatprep.subr.mxu0 0.0
    %844 = vmatpush2.msra.mxu0 0.0
    %845 = vmatprep.subr.mxu0 0.0
    %846 = vmatpush2.msra.mxu0 0.0
    %847 = vmatprep.subr.mxu0 0.0
    %848 = vmatpush2.msra.mxu0 0.0
    %849 = vmatprep.subr.mxu0 0.0
    %850 = vmatpush2.msra.mxu0 0.0
    %851 = vmatprep.subr.mxu0 0.0
    %852 = vmatpush2.msra.mxu0 0.0
    %853 = vmatprep.subr.mxu0 0.0
    %854 = vmatpush2.msra.mxu0 0.0
    %855 = vmatprep.subr.mxu0 0.0
    %856 = vmatpush2.msra.mxu0 0.0
    %857 = vmatprep.subr.mxu0 0.0
    %858 = vmatpush2.msra.mxu0 0.0
    %859 = vmatprep.subr.mxu0 0.0
    %860 = vmatpush2.msra.mxu0 0.0
    %861 = vmatprep.subr.mxu0 0.0
    %862 = vmatpush2.msra.mxu0 0.0
    %863 = vmatprep.subr.mxu0 0.0
    %864 = vmatpush2.msra.mxu0 0.0
    %865 = vmatprep.subr.mxu0 0.0
    %866 = vmatpush2.msra.mxu0 0.0
    %867 = vmatprep.mubr.f32.mxu0 0.0
    %868 = vmatmul.mubr.f32.gmra.mxu0 %v801
    %v869 = vpop.f32.mrf.mxu0
    %v870 = vadd.f32 0.0, %v869
    %v871 = vpop.f32.mrf.mxu0
    %872 = vdwg.mxu0
    %v873 = vadd.f32 %v167, %v870
    %v874 = vtanh.pop %v873
    %v875 = vxor.u32 %v873, 2147483648
    %v876 = vmul.f32 %v875, 1.442695
    %v877 = vpow.pop %v876
    %v878 = vadd.f32 %v877, 1.0
    %v879 = vrcp.pop %v878
    %v880 = vmul.f32 1.0, %v879
    %v881 = vsel %vm188, %v874, %v880
    %v882 = vmul.f32 %v881, %v791
    %884 = vrot.lane.b32.xlu0 %v881, 64
    %v885 = vpop.permute.xlu0 %884
    %v887 = vmul.f32 %v881, %v885
    %889 = vrot.lane.b32.xlu0 %v887, 32
    %v890 = vpop.permute.xlu0 %889
    %v892 = vadd.f32 %v882, %v890
    %v893 = vtanh.pop %v892
    %895 = vrot.lane.b32.xlu0 %v893, 64
    %v896 = vpop.permute.xlu0 %895
    %v898 = vmul.f32 %v881, %v896
    %900 = vrot.lane.b32.xlu0 %v898, 32
    %v901 = vpop.permute.xlu0 %900
    %v902 = vsel %vm189, %v901, 0
    %904 = vmatprep.subr.mxu0 0.0
    %905 = vmatpush1.msra.mxu0 0.0
    %906 = vmatprep.subr.mxu0 0.0
    %907 = vmatpush1.msra.mxu0 0.0
    %908 = vmatprep.subr.mxu0 0.0
    %909 = vmatpush1.msra.mxu0 0.0
    %910 = vmatprep.subr.mxu0 0.0
    %911 = vmatpush1.msra.mxu0 0.0
    %912 = vmatprep.subr.mxu0 0.0
    %913 = vmatpush1.msra.mxu0 0.0
    %914 = vmatprep.subr.mxu0 0.0
    %915 = vmatpush1.msra.mxu0 0.0
    %916 = vmatprep.subr.mxu0 0.0
    %917 = vmatpush1.msra.mxu0 0.0
    %918 = vmatprep.subr.mxu0 0.0
    %919 = vmatpush1.msra.mxu0 0.0
    %920 = vmatprep.subr.mxu0 0.0
    %921 = vmatpush1.msra.mxu0 0.0
    %922 = vmatprep.subr.mxu0 0.0
    %923 = vmatpush1.msra.mxu0 0.0
    %924 = vmatprep.subr.mxu0 0.0
    %925 = vmatpush1.msra.mxu0 0.0
    %926 = vmatprep.subr.mxu0 0.0
    %927 = vmatpush1.msra.mxu0 0.0
    %928 = vmatprep.subr.mxu0 0.0
    %929 = vmatpush1.msra.mxu0 %v181
    %930 = vmatprep.subr.mxu0 0.0
    %931 = vmatpush1.msra.mxu0 %v180
    %932 = vmatprep.subr.mxu0 0.0
    %933 = vmatpush1.msra.mxu0 %v179
    %934 = vmatprep.subr.mxu0 0.0
    %935 = vmatpush1.msra.mxu0 %v178
    %936 = vmatprep.subr.mxu0 0.0
    %937 = vmatpush2.msra.mxu0 0.0
    %938 = vmatprep.subr.mxu0 0.0
    %939 = vmatpush2.msra.mxu0 0.0
    %940 = vmatprep.subr.mxu0 0.0
    %941 = vmatpush2.msra.mxu0 0.0
    %942 = vmatprep.subr.mxu0 0.0
    %943 = vmatpush2.msra.mxu0 0.0
    %944 = vmatprep.subr.mxu0 0.0
    %945 = vmatpush2.msra.mxu0 0.0
    %946 = vmatprep.subr.mxu0 0.0
    %947 = vmatpush2.msra.mxu0 0.0
    %948 = vmatprep.subr.mxu0 0.0
    %949 = vmatpush2.msra.mxu0 0.0
    %950 = vmatprep.subr.mxu0 0.0
    %951 = vmatpush2.msra.mxu0 0.0
    %952 = vmatprep.subr.mxu0 0.0
    %953 = vmatpush2.msra.mxu0 0.0
    %954 = vmatprep.subr.mxu0 0.0
    %955 = vmatpush2.msra.mxu0 0.0
    %956 = vmatprep.subr.mxu0 0.0
    %957 = vmatpush2.msra.mxu0 0.0
    %958 = vmatprep.subr.mxu0 0.0
    %959 = vmatpush2.msra.mxu0 0.0
    %960 = vmatprep.subr.mxu0 0.0
    %961 = vmatpush2.msra.mxu0 0.0
    %962 = vmatprep.subr.mxu0 0.0
    %963 = vmatpush2.msra.mxu0 0.0
    %964 = vmatprep.subr.mxu0 0.0
    %965 = vmatpush2.msra.mxu0 0.0
    %966 = vmatprep.subr.mxu0 0.0
    %967 = vmatpush2.msra.mxu0 0.0
    %968 = vmatprep.mubr.f32.mxu0 0.0
    %969 = vmatmul.mubr.f32.gmra.mxu0 %v902
    %v970 = vpop.f32.mrf.mxu0
    %v971 = vadd.f32 0.0, %v970
    %v972 = vpop.f32.mrf.mxu0
    %973 = vdwg.mxu0
    %v974 = vadd.f32 %v177, %v971
    %v975 = vtanh.pop %v974
    %v976 = vxor.u32 %v974, 2147483648
    %v977 = vmul.f32 %v976, 1.442695
    %v978 = vpow.pop %v977
    %v979 = vadd.f32 %v978, 1.0
    %v980 = vrcp.pop %v979
    %v981 = vmul.f32 1.0, %v980
    %v982 = vsel %vm188, %v975, %v981
    %v983 = vmul.f32 %v982, %v892
    %985 = vrot.lane.b32.xlu0 %v982, 64
    %v986 = vpop.permute.xlu0 %985
    %v988 = vmul.f32 %v982, %v986
    %990 = vrot.lane.b32.xlu0 %v988, 32
    %v991 = vpop.permute.xlu0 %990
    %v993 = vadd.f32 %v983, %v991
    %v994 = vtanh.pop %v993
    %996 = vrot.lane.b32.xlu0 %v994, 64
    %v997 = vpop.permute.xlu0 %996
    %v999 = vmul.f32 %v982, %v997
    %1001 = vrot.lane.b32.xlu0 %v999, 32
    %v1002 = vpop.permute.xlu0 %1001
    %vm1004 = vcmask 254976
    %1005 = vst.msk [vmem:[#allocation13] sm:$0x3] %vm1004, %v1002
    %1007 = vrot.lane.b32.xlu0 %v993, 96
    %v1008 = vpop.permute.xlu0 %1007
    %1010 = vst.msk [vmem:[#allocation15] sm:$0x3] %vm1004, %v1008
    %v1011 = vrot.slane %v393, 7
    %v1013 = vrot.slane %v494, 6
    %v1015 = vrot.slane %v595, 5
    %v1017 = vrot.slane %v696, 4
    %v1019 = vrot.slane %v797, 3
    %v1021 = vrot.slane %v898, 2
    %v1023 = vrot.slane %v999, 1
    %v1025 = vrot.slane %v292, 1
    %v1027 = vrot.slane %v494, 7
    %v1029 = vrot.slane %v595, 6
    %v1031 = vrot.slane %v696, 5
    %v1033 = vrot.slane %v797, 4
    %v1035 = vrot.slane %v898, 3
    %v1037 = vrot.slane %v999, 2
    %v1039 = vsel %vm106, %v292, %v1011
    %vm1040 = vcmask 1041408
    %v1041 = vsel %vm1040, %v1039, %v1013
    %vm1042 = vcmask 1042432
    %v1043 = vsel %vm1042, %v1041, %v1015
    %vm1044 = vcmask 1043456
    %v1045 = vsel %vm1044, %v1043, %v1017
    %vm1046 = vcmask 1044480
    %v1047 = vsel %vm1046, %v1045, %v1019
    %vm1048 = vcmask 1045504
    %v1049 = vsel %vm1048, %v1047, %v1021
    %vm1050 = vcmask 1046528
    %v1051 = vsel %vm1050, %v1049, %v1023
    %v1052 = vsel %vm106, %v1025, %v393
    %v1053 = vsel %vm1040, %v1052, %v1027
    %v1054 = vsel %vm1042, %v1053, %v1029
    %v1055 = vsel %vm1044, %v1054, %v1031
    %v1056 = vsel %vm1046, %v1055, %v1033
    %v1057 = vsel %vm1048, %v1056, %v1035
    %v1058 = vsel %vm1050, %v1057, %v1037
    %v1059 = vld [vmem:[#allocation9] sm:$0xff]
    %v1060 = vld [vmem:[#allocation9 + $0x8] sm:$0xff]
    %v1061 = vld [vmem:[#allocation9 + $0x10] sm:$0xff]
    %v1062 = vld [vmem:[#allocation9 + $0x18] sm:$0xff]
    %v1063 = vld [vmem:[#allocation10] sm:$0x1]
    %v1065 = vlaneseq
    %v1066 = vshrl.u32 %v1065, 7
    %v1067 = vsub.s32 0, %v1066
    %v1068 = vrot.slane %v1063, %v1067
    %1072 = vrot.lane.b32.xlu0 %v1051, 32
    %v1073 = vpop.permute.xlu0 %1072
    %1074 = vrot.lane.b32.xlu0 %v1058, 32
    %v1075 = vpop.permute.xlu0 %1074
    %v1076 = vsel %vm189, %v1073, 0
    %v1078 = vsel %vm189, %v1075, 0
    %1080 = vmatprep.subr.mxu0 0.0
    %1081 = vmatpush1.msra.mxu0 0.0
    %1082 = vmatprep.subr.mxu0 0.0
    %1083 = vmatpush1.msra.mxu0 0.0
    %1084 = vmatprep.subr.mxu0 0.0
    %1085 = vmatpush1.msra.mxu0 0.0
    %1086 = vmatprep.subr.mxu0 0.0
    %1087 = vmatpush1.msra.mxu0 0.0
    %1088 = vmatprep.subr.mxu0 0.0
    %1089 = vmatpush1.msra.mxu0 0.0
    %1090 = vmatprep.subr.mxu0 0.0
    %1091 = vmatpush1.msra.mxu0 0.0
    %1092 = vmatprep.subr.mxu0 0.0
    %1093 = vmatpush1.msra.mxu0 0.0
    %1094 = vmatprep.subr.mxu0 0.0
    %1095 = vmatpush1.msra.mxu0 0.0
    %1096 = vmatprep.subr.mxu0 0.0
    %1097 = vmatpush1.msra.mxu0 0.0
    %1098 = vmatprep.subr.mxu0 0.0
    %1099 = vmatpush1.msra.mxu0 0.0
    %1100 = vmatprep.subr.mxu0 0.0
    %1101 = vmatpush1.msra.mxu0 0.0
    %1102 = vmatprep.subr.mxu0 0.0
    %1103 = vmatpush1.msra.mxu0 0.0
    %1104 = vmatprep.subr.mxu0 0.0
    %1105 = vmatpush1.msra.mxu0 %v1062
    %1106 = vmatprep.subr.mxu0 0.0
    %1107 = vmatpush1.msra.mxu0 %v1061
    %1108 = vmatprep.subr.mxu0 0.0
    %1109 = vmatpush1.msra.mxu0 %v1060
    %1110 = vmatprep.subr.mxu0 0.0
    %1111 = vmatpush1.msra.mxu0 %v1059
    %1112 = vmatprep.subr.mxu0 0.0
    %1113 = vmatpush2.msra.mxu0 0.0
    %1114 = vmatprep.subr.mxu0 0.0
    %1115 = vmatpush2.msra.mxu0 0.0
    %1116 = vmatprep.subr.mxu0 0.0
    %1117 = vmatpush2.msra.mxu0 0.0
    %1118 = vmatprep.subr.mxu0 0.0
    %1119 = vmatpush2.msra.mxu0 0.0
    %1120 = vmatprep.subr.mxu0 0.0
    %1121 = vmatpush2.msra.mxu0 0.0
    %1122 = vmatprep.subr.mxu0 0.0
    %1123 = vmatpush2.msra.mxu0 0.0
    %1124 = vmatprep.subr.mxu0 0.0
    %1125 = vmatpush2.msra.mxu0 0.0
    %1126 = vmatprep.subr.mxu0 0.0
    %1127 = vmatpush2.msra.mxu0 0.0
    %1128 = vmatprep.subr.mxu0 0.0
    %1129 = vmatpush2.msra.mxu0 0.0
    %1130 = vmatprep.subr.mxu0 0.0
    %1131 = vmatpush2.msra.mxu0 0.0
    %1132 = vmatprep.subr.mxu0 0.0
    %1133 = vmatpush2.msra.mxu0 0.0
    %1134 = vmatprep.subr.mxu0 0.0
    %1135 = vmatpush2.msra.mxu0 0.0
    %1136 = vmatprep.subr.mxu0 0.0
    %1137 = vmatpush2.msra.mxu0 0.0
    %1138 = vmatprep.subr.mxu0 0.0
    %1139 = vmatpush2.msra.mxu0 0.0
    %1140 = vmatprep.subr.mxu0 0.0
    %1141 = vmatpush2.msra.mxu0 0.0
    %1142 = vmatprep.subr.mxu0 0.0
    %1143 = vmatpush2.msra.mxu0 0.0
    %1144 = vmatprep.mubr.f32.mxu0 0.0
    %1145 = vmatmul.mubr.f32.gmra.mxu0 %v1076
    %v1146 = vpop.f32.mrf.mxu0
    %v1147 = vadd.f32 %v1068, %v1146
    %v1148 = vpop.f32.mrf.mxu0
    %1149 = vmatprep.mubr.f32.mxu0 0.0
    %1150 = vmatmul.mubr.f32.gmra.mxu0 %v1078
    %v1151 = vpop.f32.mrf.mxu0
    %v1152 = vadd.f32 %v1068, %v1151
    %v1153 = vpop.f32.mrf.mxu0
    %1154 = vdwg.mxu0
    %1155 = vst [vmem:[#allocation12] sm:$0xff] %v1147
    %1156 = vst [vmem:[#allocation12 + $0x8] sm:$0xff] %v1152
    // Predicated region
    $region50: #{rnn_forward.1} parent=1 // pred_check
      _
    $region51: #{rnn_forward.1} parent=1 // pred_check_branch
      %1158 = sbr.rel (0) target = $region53
    $region52: #{rnn_forward.1} parent=1 // pred_region
      %s1160 = ssub.s32 256, 256
      %1161 = vsyncadd [#allocation4], %s1160
      %s1162 = sshll.u32 [#allocation12], 4
      %s1163 = int_to_ptr.vmem [resolvable:$true] %s1162
      %1168 = dma.vmem_to_hbm [thread:$0]  %s1163, 256, %s7, [#allocation4], 128, 128, 8
    $region53: #{rnn_forward.1} parent=1 // pred_fallthru
      _
    // Predicated region
    $region54: #{rnn_forward.1} parent=1 // pred_check
      _
    $region55: #{rnn_forward.1} parent=1 // pred_check_branch
      %1170 = sbr.rel (0) target = $region57
    $region56: #{rnn_forward.1} parent=1 // pred_region
      %s1172 = ssub.s32 32, 32
      %1173 = vsyncadd [#allocation14], %s1172
      %s1175 = sshll.u32 [#allocation13], 4
      %s1176 = int_to_ptr.vmem [resolvable:$true] %s1175
      %1178 = dma.vmem_to_hbm [thread:$0]  %s1176, 32, %s8, [#allocation14]
    $region57: #{rnn_forward.1} parent=1 // pred_fallthru
      _
    // Predicated region
    $region58: #{rnn_forward.1} parent=1 // pred_check
      _
    $region59: #{rnn_forward.1} parent=1 // pred_check_branch
      %1180 = sbr.rel (0) target = $region61
    $region60: #{rnn_forward.1} parent=1 // pred_region
      %s1182 = ssub.s32 32, 32
      %1183 = vsyncadd [#allocation14], %s1182
      %s1185 = sshll.u32 [#allocation15], 4
      %s1186 = int_to_ptr.vmem [resolvable:$true] %s1185
      %1188 = dma.vmem_to_hbm [thread:$0]  %s1186, 32, %s9, [#allocation14]
    $region61: #{rnn_forward.1} parent=1 // pred_fallthru
      _
    // Predicated region
    $region62: #{rnn_forward.1} parent=1 // pred_check
      _
    $region63: #{rnn_forward.1} parent=1 // pred_check_branch
      %1190 = sbr.rel (0) target = $region65
    $region64: #{rnn_forward.1} parent=1 // pred_region
      %1191 = dma.done [#allocation4], 256
    $region65: #{rnn_forward.1} parent=1 // pred_fallthru
      _
    // Predicated region
    $region66: #{rnn_forward.1} parent=1 // pred_check
      _
    $region67: #{rnn_forward.1} parent=1 // pred_check_branch
      %1193 = sbr.rel (0) target = $region69
    $region68: #{rnn_forward.1} parent=1 // pred_region
      %1194 = dma.done [#allocation14], 32
    $region69: #{rnn_forward.1} parent=1 // pred_fallthru
      _
    // Predicated region
    $region70: #{rnn_forward.1} parent=1 // pred_check
      _
    $region71: #{rnn_forward.1} parent=1 // pred_check_branch
      %1196 = sbr.rel (0) target = $region73
    $region72: #{rnn_forward.1} parent=1 // pred_region
      %1197 = dma.done [#allocation14], 32
    $region73: #{rnn_forward.1} parent=1 // pred_fallthru
      _
    %1198 = vsyncpa [#allocation3], 1
    %1199 = vsyncpa [#allocation8], 1
    %1200 = vsyncpa [#allocation11], 1
    %1201 = vsyncpa [#allocation4], 1
    %1202 = vsyncpa [#allocation14], 1
    %1203 = vsyncpa [#allocation5], 1

</llo_original>
